<compile_context>
chip_gen: v6e
topology: v6e:2x2x1
jax: 0.10.0
libtpu: 0.0.40
codegen_flags: <defaults>
</compile_context>

<pallas_src>
import functools

import jax
import jax.numpy as jnp
from jax.experimental import pallas as pl
from jax.experimental.pallas import tpu as pltpu

BINS = 10
LOSS_WEIGHT = 1.0
LANES = 128
MAX_BLOCK_ROWS = 2048  # 2048 * 128 * 4B = 1 MiB per f32 input tile


def ghmc_kernel(pred_ref, target_ref, lw_ref, loss_ref, count_acc, bce_acc,
                *, bins, loss_weight):
    step = pl.program_id(0)
    last = pl.num_programs(0) - 1

    @pl.when(step == 0)
    def _():
        count_acc[...] = jnp.zeros_like(count_acc)
        bce_acc[...] = jnp.zeros_like(bce_acc)

    pred = pred_ref[...].astype(jnp.float32)      # (R, 128) logits (pred[:, 1])
    target = target_ref[...].astype(jnp.float32)  # (R, 128) binary targets
    valid = lw_ref[...] > 0                       # (R, 128); padding -> False

    s = jax.nn.sigmoid(pred)
    g = jnp.abs(s - target)                       # gradient-norm proxy, in [0, 1]

    # One bin index per element instead of two compares per bin.
    # Edges are i/bins with the last edge nudged to 1 + 1e-6 and g <= 1 for
    # binary targets, so bin(g) = min(floor(g*bins), bins-1) reproduces the
    # reference binning. Invalid (or padded) elements get the out-of-range
    # sentinel `bins` and never match any bin.
    g_bin = jnp.minimum((g * bins).astype(jnp.int32), bins - 1)
    g_bin = jnp.where(valid, g_bin, bins)

    # Numerically-stable BCE-with-logits, reusing the sigmoid already computed
    # (one fewer exp per element through the single EUP slot):
    #   log1p(exp(-|p|)) == -log(sigmoid(|p|)) == -log(where(p >= 0, s, 1 - s))
    bce = jnp.maximum(pred, 0.0) - pred * target - jnp.log(
        jnp.where(pred >= 0.0, s, 1.0 - s))

    # Per-bin partial sums. Reducing over the leading axis of (sub, 8, 128) is
    # elementwise VPU vreg adds (no cross-lane XLU work per tile); the expensive
    # cross-lane reductions happen exactly once, in the finalize step below.
    rows = pred.shape[0]
    sub = rows // 8
    for i in range(bins):
        m = (g_bin == i).astype(jnp.float32)
        count_acc[i] += jnp.sum(m.reshape(sub, 8, LANES), axis=0)
        bce_acc[i] += jnp.sum((m * bce).reshape(sub, 8, LANES), axis=0)

    @pl.when(step == last)
    def _():
        # loss = loss_weight / n_nonempty * sum_i bce_sum_i / count_i
        total = jnp.float32(0.0)
        n_nonempty = jnp.float32(0.0)
        for i in range(bins):
            c = jnp.sum(count_acc[i])
            b = jnp.sum(bce_acc[i])
            nonempty = c > 0.0
            total += jnp.where(nonempty, b / jnp.maximum(c, 1.0), 0.0)
            n_nonempty += jnp.where(nonempty, 1.0, 0.0)
        loss = jnp.where(n_nonempty > 0.0, total / n_nonempty, 0.0) * loss_weight
        loss_ref[0] = loss


def ghmc_loss(pred, target, label_weight, *, bins=BINS, loss_weight=LOSS_WEIGHT,
              max_block_rows=MAX_BLOCK_ROWS):
    """pred: [N, C] logits; target: [N] binary; label_weight: [N] (>0 == valid)."""
    p = pred[:, 1]          # column extraction fuses with the pad/reshape below
    n = p.shape[0]

    rows = max(-(-n // LANES), 8)
    rows = ((rows + 7) // 8) * 8
    block_rows = max(8, (min(int(max_block_rows), rows) // 8) * 8)
    num_tiles = -(-rows // block_rows)
    rows_padded = num_tiles * block_rows
    pad = rows_padded * LANES - n

    # Padding carries label_weight == 0, so it is invalid and contributes nothing.
    p2 = jnp.pad(p, (0, pad)).reshape(rows_padded, LANES)
    t2 = jnp.pad(target, (0, pad)).reshape(rows_padded, LANES)
    w2 = jnp.pad(label_weight, (0, pad)).reshape(rows_padded, LANES)

    kernel = functools.partial(ghmc_kernel, bins=bins, loss_weight=loss_weight)
    out = pl.pallas_call(
        kernel,
        out_shape=jax.ShapeDtypeStruct((1,), jnp.float32),
        grid=(num_tiles,),
        in_specs=[
            pl.BlockSpec((block_rows, LANES), lambda i: (i, 0)),
            pl.BlockSpec((block_rows, LANES), lambda i: (i, 0)),
            pl.BlockSpec((block_rows, LANES), lambda i: (i, 0)),
        ],
        out_specs=pl.BlockSpec(memory_space=pltpu.MemorySpace.SMEM),
        scratch_shapes=[
            pltpu.VMEM((bins, 8, LANES), jnp.float32),
            pltpu.VMEM((bins, 8, LANES), jnp.float32),
        ],
        compiler_params=pltpu.CompilerParams(
            dimension_semantics=("arbitrary",)),
    )(p2, t2, w2)
    return out[0]


def ghmc_loss_ref(pred, target, label_weight, *, bins=BINS, loss_weight=LOSS_WEIGHT):
    """Pure-JAX reference mirroring the PyTorch forward (two-compare binning)."""
    p = pred[:, 1].astype(jnp.float32)
    t = target.astype(jnp.float32)
    lw = label_weight.astype(jnp.float32)
    valid = lw > 0.0
    g = jnp.abs(jax.nn.sigmoid(p) - t)
    tot = jnp.maximum(jnp.sum(valid.astype(jnp.float32)), 1.0)
    weights = jnp.zeros_like(p)
    n = 0.0
    for i in range(bins):
        lo = i / bins
        hi = (i + 1) / bins + (1e-6 if i == bins - 1 else 0.0)
        inds = (g >= lo) & (g < hi) & valid
        num = jnp.sum(inds.astype(jnp.float32))
        w_i = jnp.where(num > 0.0, tot / jnp.maximum(num, 1.0), 0.0)
        weights = weights + inds.astype(jnp.float32) * w_i
        n = n + jnp.where(num > 0.0, 1.0, 0.0)
    weights = jnp.where(n > 0.0, weights / jnp.maximum(n, 1.0), weights)
    bce = jnp.maximum(p, 0.0) - p * t + jnp.log1p(jnp.exp(-jnp.abs(p)))
    return jnp.sum(weights * bce) / tot * loss_weight


if __name__ == "__main__":
    key = jax.random.PRNGKey(0)
    k1, k2, k3, k4, k5, k6 = jax.random.split(key, 6)

    # Small test matching the module interface (batch=8, 2 classes).
    batch, num_classes = 8, 2
    pred = jax.random.normal(k1, (batch, num_classes), dtype=jnp.float32)
    target = jax.random.bernoulli(k2, 0.5, (batch,)).astype(jnp.float32)
    label_weight = (jax.random.uniform(k3, (batch,)) > 0.2).astype(jnp.float32)

    loss = jax.block_until_ready(ghmc_loss(pred, target, label_weight))
    ref = jax.block_until_ready(ghmc_loss_ref(pred, target, label_weight))
    assert jnp.isfinite(loss), "loss is not finite"
    assert jnp.allclose(loss, ref, atol=1e-5, rtol=1e-5), (loss, ref)

    # Larger test exercising the multi-tile grid / accumulator path.
    batch2 = 4096
    pred2 = jax.random.normal(k4, (batch2, num_classes), dtype=jnp.float32) * 3.0
    target2 = jax.random.bernoulli(k5, 0.5, (batch2,)).astype(jnp.float32)
    label_weight2 = (jax.random.uniform(k6, (batch2,)) > 0.1).astype(jnp.float32)

    loss2 = jax.block_until_ready(
        ghmc_loss(pred2, target2, label_weight2, max_block_rows=8))
    ref2 = jax.block_until_ready(ghmc_loss_ref(pred2, target2, label_weight2))
    assert jnp.isfinite(loss2), "loss2 is not finite"
    assert jnp.allclose(loss2, ref2, atol=1e-5, rtol=1e-4), (loss2, ref2)

    print("KERNEL_OK")
</pallas_src>

<mosaic_0001>
module attributes {stable_mosaic.version = 11 : i64} {
  func.func @ghmc_kernel(%arg0: i32, %arg1: memref<8x128xf32, #tpu.memory_space<vmem>>, %arg2: memref<8x128xf32, #tpu.memory_space<vmem>>, %arg3: memref<8x128xf32, #tpu.memory_space<vmem>>, %arg4: memref<1xf32, #tpu.memory_space<smem>>, %arg5: memref<10x8x128xf32, #tpu.memory_space<vmem>>, %arg6: memref<10x8x128xf32, #tpu.memory_space<vmem>>) attributes {dimension_semantics = [#tpu.dimension_semantics<arbitrary>], iteration_bounds = array<i64: 1>, scalar_prefetch = 0 : i64, scratch_operands = 2 : i64, tpu.core_type = #tpu.core_type<tc>, window_params = [{transform_indices = @transform_0, window_bounds = array<i64: 8, 128>}, {transform_indices = @transform_1, window_bounds = array<i64: 8, 128>}, {transform_indices = @transform_2, window_bounds = array<i64: 8, 128>}, {transform_indices = @transform_3, window_bounds = array<i64: 1>}]} {
    %c0_i32 = arith.constant 0 : i32
    %0 = arith.cmpi eq, %arg0, %c0_i32 : i32
    %1 = arith.extui %0 : i1 to i32
    %c0_i32_0 = arith.constant 0 : i32
    %2 = arith.cmpi ne, %1, %c0_i32_0 : i32
    scf.if %2 {
      %cst_146 = arith.constant 0.000000e+00 : f32
      %246 = vector.broadcast %cst_146 : f32 to vector<10x8x128xf32>
      %c0_147 = arith.constant 0 : index
      %c0_148 = arith.constant 0 : index
      %c0_149 = arith.constant 0 : index
      %247 = vector.load %arg5[%c0_147, %c0_148, %c0_149] : memref<10x8x128xf32, #tpu.memory_space<vmem>>, vector<10x8x128xf32>
      tpu.vector_store %arg5[%c0_147, %c0_148, %c0_149], %246 {strides = array<i32>} : memref<10x8x128xf32, #tpu.memory_space<vmem>>, vector<10x8x128xf32>,
      %cst_150 = arith.constant 0.000000e+00 : f32
      %248 = vector.broadcast %cst_150 : f32 to vector<10x8x128xf32>
      %c0_151 = arith.constant 0 : index
      %c0_152 = arith.constant 0 : index
      %c0_153 = arith.constant 0 : index
      %249 = vector.load %arg6[%c0_151, %c0_152, %c0_153] : memref<10x8x128xf32, #tpu.memory_space<vmem>>, vector<10x8x128xf32>
      tpu.vector_store %arg6[%c0_151, %c0_152, %c0_153], %248 {strides = array<i32>} : memref<10x8x128xf32, #tpu.memory_space<vmem>>, vector<10x8x128xf32>,
    } else {
    }
    %c0 = arith.constant 0 : index
    %c0_1 = arith.constant 0 : index
    %3 = vector.load %arg1[%c0, %c0_1] : memref<8x128xf32, #tpu.memory_space<vmem>>, vector<8x128xf32>
    %c0_2 = arith.constant 0 : index
    %c0_3 = arith.constant 0 : index
    %4 = vector.load %arg2[%c0_2, %c0_3] : memref<8x128xf32, #tpu.memory_space<vmem>>, vector<8x128xf32>
    %c0_4 = arith.constant 0 : index
    %c0_5 = arith.constant 0 : index
    %5 = vector.load %arg3[%c0_4, %c0_5] : memref<8x128xf32, #tpu.memory_space<vmem>>, vector<8x128xf32>
    %cst = arith.constant 0.000000e+00 : f32
    %6 = vector.broadcast %cst : f32 to vector<8x128xf32>
    %7 = arith.cmpf ogt, %5, %6 : vector<8x128xf32>
    %8 = arith.negf %3 : vector<8x128xf32>
    %9 = math.exp %8 : vector<8x128xf32>
    %cst_6 = arith.constant 1.000000e+00 : f32
    %10 = vector.broadcast %cst_6 : f32 to vector<8x128xf32>
    %11 = arith.addf %10, %9 : vector<8x128xf32>
    %12 = arith.divf %10, %11 : vector<8x128xf32>
    %13 = arith.subf %12, %4 : vector<8x128xf32>
    %14 = math.absf %13 : vector<8x128xf32>
    %cst_7 = arith.constant 1.000000e+01 : f32
    %15 = vector.broadcast %cst_7 : f32 to vector<8x128xf32>
    %16 = arith.mulf %14, %15 : vector<8x128xf32>
    %17 = arith.fptosi %16 : vector<8x128xf32> to vector<8x128xi32>
    %c9_i32 = arith.constant 9 : i32
    %18 = vector.broadcast %c9_i32 : i32 to vector<8x128xi32>
    %19 = arith.minsi %17, %18 : vector<8x128xi32>
    %c10_i32 = arith.constant 10 : i32
    %20 = vector.broadcast %c10_i32 : i32 to vector<8x128xi32>
    %21 = arith.select %7, %19, %20 : vector<8x128xi1>, vector<8x128xi32>
    %cst_8 = arith.constant 0.000000e+00 : f32
    %22 = vector.broadcast %cst_8 : f32 to vector<8x128xf32>
    %23 = arith.maximumf %3, %22 : vector<8x128xf32>
    %24 = arith.mulf %3, %4 : vector<8x128xf32>
    %25 = arith.subf %23, %24 : vector<8x128xf32>
    %cst_9 = arith.constant 0.000000e+00 : f32
    %26 = vector.broadcast %cst_9 : f32 to vector<8x128xf32>
    %27 = arith.cmpf oge, %3, %26 : vector<8x128xf32>
    %cst_10 = arith.constant 1.000000e+00 : f32
    %28 = vector.broadcast %cst_10 : f32 to vector<8x128xf32>
    %29 = arith.subf %28, %12 : vector<8x128xf32>
    %30 = arith.select %27, %12, %29 : vector<8x128xi1>, vector<8x128xf32>
    %31 = math.log %30 : vector<8x128xf32>
    %32 = arith.subf %25, %31 : vector<8x128xf32>
    %c0_i32_11 = arith.constant 0 : i32
    %33 = vector.broadcast %c0_i32_11 : i32 to vector<8x128xi32>
    %34 = arith.cmpi eq, %21, %33 : vector<8x128xi32>
    %35 = arith.extui %34 : vector<8x128xi1> to vector<8x128xi32>
    %36 = arith.sitofp %35 : vector<8x128xi32> to vector<8x128xf32>
    %c0_12 = arith.constant 0 : index
    %c0_13 = arith.constant 0 : index
    %c0_14 = arith.constant 0 : index
    %37 = vector.load %arg5[%c0_12, %c0_13, %c0_14] : memref<10x8x128xf32, #tpu.memory_space<vmem>>, vector<1x8x128xf32>
    %38 = vector.shape_cast %37 : vector<1x8x128xf32> to vector<8x128xf32>
    %39 = vector.shape_cast %36 : vector<8x128xf32> to vector<1x8x128xf32>
    %cst_15 = arith.constant dense<0.000000e+00> : vector<8x128xf32>
    %40 = vector.multi_reduction <add>, %39, %cst_15 [0] : vector<1x8x128xf32> to vector<8x128xf32>
    %41 = arith.addf %38, %40 : vector<8x128xf32>
    %c0_16 = arith.constant 0 : index
    %c0_17 = arith.constant 0 : index
    %c0_18 = arith.constant 0 : index
    %42 = vector.load %arg5[%c0_16, %c0_17, %c0_18] : memref<10x8x128xf32, #tpu.memory_space<vmem>>, vector<1x8x128xf32>
    %43 = vector.shape_cast %42 : vector<1x8x128xf32> to vector<8x128xf32>
    %44 = vector.shape_cast %41 : vector<8x128xf32> to vector<1x8x128xf32>
    tpu.vector_store %arg5[%c0_16, %c0_17, %c0_18], %44 {strides = array<i32>} : memref<10x8x128xf32, #tpu.memory_space<vmem>>, vector<1x8x128xf32>,
    %c0_19 = arith.constant 0 : index
    %c0_20 = arith.constant 0 : index
    %c0_21 = arith.constant 0 : index
    %45 = vector.load %arg6[%c0_19, %c0_20, %c0_21] : memref<10x8x128xf32, #tpu.memory_space<vmem>>, vector<1x8x128xf32>
    %46 = vector.shape_cast %45 : vector<1x8x128xf32> to vector<8x128xf32>
    %47 = arith.mulf %36, %32 : vector<8x128xf32>
    %48 = vector.shape_cast %47 : vector<8x128xf32> to vector<1x8x128xf32>
    %cst_22 = arith.constant dense<0.000000e+00> : vector<8x128xf32>
    %49 = vector.multi_reduction <add>, %48, %cst_22 [0] : vector<1x8x128xf32> to vector<8x128xf32>
    %50 = arith.addf %46, %49 : vector<8x128xf32>
    %c0_23 = arith.constant 0 : index
    %c0_24 = arith.constant 0 : index
    %c0_25 = arith.constant 0 : index
    %51 = vector.load %arg6[%c0_23, %c0_24, %c0_25] : memref<10x8x128xf32, #tpu.memory_space<vmem>>, vector<1x8x128xf32>
    %52 = vector.shape_cast %51 : vector<1x8x128xf32> to vector<8x128xf32>
    %53 = vector.shape_cast %50 : vector<8x128xf32> to vector<1x8x128xf32>
    tpu.vector_store %arg6[%c0_23, %c0_24, %c0_25], %53 {strides = array<i32>} : memref<10x8x128xf32, #tpu.memory_space<vmem>>, vector<1x8x128xf32>,
    %c1_i32 = arith.constant 1 : i32
    %54 = vector.broadcast %c1_i32 : i32 to vector<8x128xi32>
    %55 = arith.cmpi eq, %21, %54 : vector<8x128xi32>
    %56 = arith.extui %55 : vector<8x128xi1> to vector<8x128xi32>
    %57 = arith.sitofp %56 : vector<8x128xi32> to vector<8x128xf32>
    %c1 = arith.constant 1 : index
    %c0_26 = arith.constant 0 : index
    %c0_27 = arith.constant 0 : index
    %58 = vector.load %arg5[%c1, %c0_26, %c0_27] : memref<10x8x128xf32, #tpu.memory_space<vmem>>, vector<1x8x128xf32>
    %59 = vector.shape_cast %58 : vector<1x8x128xf32> to vector<8x128xf32>
    %60 = vector.shape_cast %57 : vector<8x128xf32> to vector<1x8x128xf32>
    %cst_28 = arith.constant dense<0.000000e+00> : vector<8x128xf32>
    %61 = vector.multi_reduction <add>, %60, %cst_28 [0] : vector<1x8x128xf32> to vector<8x128xf32>
    %62 = arith.addf %59, %61 : vector<8x128xf32>
    %c1_29 = arith.constant 1 : index
    %c0_30 = arith.constant 0 : index
    %c0_31 = arith.constant 0 : index
    %63 = vector.load %arg5[%c1_29, %c0_30, %c0_31] : memref<10x8x128xf32, #tpu.memory_space<vmem>>, vector<1x8x128xf32>
    %64 = vector.shape_cast %63 : vector<1x8x128xf32> to vector<8x128xf32>
    %65 = vector.shape_cast %62 : vector<8x128xf32> to vector<1x8x128xf32>
    tpu.vector_store %arg5[%c1_29, %c0_30, %c0_31], %65 {strides = array<i32>} : memref<10x8x128xf32, #tpu.memory_space<vmem>>, vector<1x8x128xf32>,
    %c1_32 = arith.constant 1 : index
    %c0_33 = arith.constant 0 : index
    %c0_34 = arith.constant 0 : index
    %66 = vector.load %arg6[%c1_32, %c0_33, %c0_34] : memref<10x8x128xf32, #tpu.memory_space<vmem>>, vector<1x8x128xf32>
    %67 = vector.shape_cast %66 : vector<1x8x128xf32> to vector<8x128xf32>
    %68 = arith.mulf %57, %32 : vector<8x128xf32>
    %69 = vector.shape_cast %68 : vector<8x128xf32> to vector<1x8x128xf32>
    %cst_35 = arith.constant dense<0.000000e+00> : vector<8x128xf32>
    %70 = vector.multi_reduction <add>, %69, %cst_35 [0] : vector<1x8x128xf32> to vector<8x128xf32>
    %71 = arith.addf %67, %70 : vector<8x128xf32>
    %c1_36 = arith.constant 1 : index
    %c0_37 = arith.constant 0 : index
    %c0_38 = arith.constant 0 : index
    %72 = vector.load %arg6[%c1_36, %c0_37, %c0_38] : memref<10x8x128xf32, #tpu.memory_space<vmem>>, vector<1x8x128xf32>
    %73 = vector.shape_cast %72 : vector<1x8x128xf32> to vector<8x128xf32>
    %74 = vector.shape_cast %71 : vector<8x128xf32> to vector<1x8x128xf32>
    tpu.vector_store %arg6[%c1_36, %c0_37, %c0_38], %74 {strides = array<i32>} : memref<10x8x128xf32, #tpu.memory_space<vmem>>, vector<1x8x128xf32>,
    %c2_i32 = arith.constant 2 : i32
    %75 = vector.broadcast %c2_i32 : i32 to vector<8x128xi32>
    %76 = arith.cmpi eq, %21, %75 : vector<8x128xi32>
    %77 = arith.extui %76 : vector<8x128xi1> to vector<8x128xi32>
    %78 = arith.sitofp %77 : vector<8x128xi32> to vector<8x128xf32>
    %c2 = arith.constant 2 : index
    %c0_39 = arith.constant 0 : index
    %c0_40 = arith.constant 0 : index
    %79 = vector.load %arg5[%c2, %c0_39, %c0_40] : memref<10x8x128xf32, #tpu.memory_space<vmem>>, vector<1x8x128xf32>
    %80 = vector.shape_cast %79 : vector<1x8x128xf32> to vector<8x128xf32>
    %81 = vector.shape_cast %78 : vector<8x128xf32> to vector<1x8x128xf32>
    %cst_41 = arith.constant dense<0.000000e+00> : vector<8x128xf32>
    %82 = vector.multi_reduction <add>, %81, %cst_41 [0] : vector<1x8x128xf32> to vector<8x128xf32>
    %83 = arith.addf %80, %82 : vector<8x128xf32>
    %c2_42 = arith.constant 2 : index
    %c0_43 = arith.constant 0 : index
    %c0_44 = arith.constant 0 : index
    %84 = vector.load %arg5[%c2_42, %c0_43, %c0_44] : memref<10x8x128xf32, #tpu.memory_space<vmem>>, vector<1x8x128xf32>
    %85 = vector.shape_cast %84 : vector<1x8x128xf32> to vector<8x128xf32>
    %86 = vector.shape_cast %83 : vector<8x128xf32> to vector<1x8x128xf32>
    tpu.vector_store %arg5[%c2_42, %c0_43, %c0_44], %86 {strides = array<i32>} : memref<10x8x128xf32, #tpu.memory_space<vmem>>, vector<1x8x128xf32>,
    %c2_45 = arith.constant 2 : index
    %c0_46 = arith.constant 0 : index
    %c0_47 = arith.constant 0 : index
    %87 = vector.load %arg6[%c2_45, %c0_46, %c0_47] : memref<10x8x128xf32, #tpu.memory_space<vmem>>, vector<1x8x128xf32>
    %88 = vector.shape_cast %87 : vector<1x8x128xf32> to vector<8x128xf32>
    %89 = arith.mulf %78, %32 : vector<8x128xf32>
    %90 = vector.shape_cast %89 : vector<8x128xf32> to vector<1x8x128xf32>
    %cst_48 = arith.constant dense<0.000000e+00> : vector<8x128xf32>
    %91 = vector.multi_reduction <add>, %90, %cst_48 [0] : vector<1x8x128xf32> to vector<8x128xf32>
    %92 = arith.addf %88, %91 : vector<8x128xf32>
    %c2_49 = arith.constant 2 : index
    %c0_50 = arith.constant 0 : index
    %c0_51 = arith.constant 0 : index
    %93 = vector.load %arg6[%c2_49, %c0_50, %c0_51] : memref<10x8x128xf32, #tpu.memory_space<vmem>>, vector<1x8x128xf32>
    %94 = vector.shape_cast %93 : vector<1x8x128xf32> to vector<8x128xf32>
    %95 = vector.shape_cast %92 : vector<8x128xf32> to vector<1x8x128xf32>
    tpu.vector_store %arg6[%c2_49, %c0_50, %c0_51], %95 {strides = array<i32>} : memref<10x8x128xf32, #tpu.memory_space<vmem>>, vector<1x8x128xf32>,
    %c3_i32 = arith.constant 3 : i32
    %96 = vector.broadcast %c3_i32 : i32 to vector<8x128xi32>
    %97 = arith.cmpi eq, %21, %96 : vector<8x128xi32>
    %98 = arith.extui %97 : vector<8x128xi1> to vector<8x128xi32>
    %99 = arith.sitofp %98 : vector<8x128xi32> to vector<8x128xf32>
    %c3 = arith.constant 3 : index
    %c0_52 = arith.constant 0 : index
    %c0_53 = arith.constant 0 : index
    %100 = vector.load %arg5[%c3, %c0_52, %c0_53] : memref<10x8x128xf32, #tpu.memory_space<vmem>>, vector<1x8x128xf32>
    %101 = vector.shape_cast %100 : vector<1x8x128xf32> to vector<8x128xf32>
    %102 = vector.shape_cast %99 : vector<8x128xf32> to vector<1x8x128xf32>
    %cst_54 = arith.constant dense<0.000000e+00> : vector<8x128xf32>
    %103 = vector.multi_reduction <add>, %102, %cst_54 [0] : vector<1x8x128xf32> to vector<8x128xf32>
    %104 = arith.addf %101, %103 : vector<8x128xf32>
    %c3_55 = arith.constant 3 : index
    %c0_56 = arith.constant 0 : index
    %c0_57 = arith.constant 0 : index
    %105 = vector.load %arg5[%c3_55, %c0_56, %c0_57] : memref<10x8x128xf32, #tpu.memory_space<vmem>>, vector<1x8x128xf32>
    %106 = vector.shape_cast %105 : vector<1x8x128xf32> to vector<8x128xf32>
    %107 = vector.shape_cast %104 : vector<8x128xf32> to vector<1x8x128xf32>
    tpu.vector_store %arg5[%c3_55, %c0_56, %c0_57], %107 {strides = array<i32>} : memref<10x8x128xf32, #tpu.memory_space<vmem>>, vector<1x8x128xf32>,
    %c3_58 = arith.constant 3 : index
    %c0_59 = arith.constant 0 : index
    %c0_60 = arith.constant 0 : index
    %108 = vector.load %arg6[%c3_58, %c0_59, %c0_60] : memref<10x8x128xf32, #tpu.memory_space<vmem>>, vector<1x8x128xf32>
    %109 = vector.shape_cast %108 : vector<1x8x128xf32> to vector<8x128xf32>
    %110 = arith.mulf %99, %32 : vector<8x128xf32>
    %111 = vector.shape_cast %110 : vector<8x128xf32> to vector<1x8x128xf32>
    %cst_61 = arith.constant dense<0.000000e+00> : vector<8x128xf32>
    %112 = vector.multi_reduction <add>, %111, %cst_61 [0] : vector<1x8x128xf32> to vector<8x128xf32>
    %113 = arith.addf %109, %112 : vector<8x128xf32>
    %c3_62 = arith.constant 3 : index
    %c0_63 = arith.constant 0 : index
    %c0_64 = arith.constant 0 : index
    %114 = vector.load %arg6[%c3_62, %c0_63, %c0_64] : memref<10x8x128xf32, #tpu.memory_space<vmem>>, vector<1x8x128xf32>
    %115 = vector.shape_cast %114 : vector<1x8x128xf32> to vector<8x128xf32>
    %116 = vector.shape_cast %113 : vector<8x128xf32> to vector<1x8x128xf32>
    tpu.vector_store %arg6[%c3_62, %c0_63, %c0_64], %116 {strides = array<i32>} : memref<10x8x128xf32, #tpu.memory_space<vmem>>, vector<1x8x128xf32>,
    %c4_i32 = arith.constant 4 : i32
    %117 = vector.broadcast %c4_i32 : i32 to vector<8x128xi32>
    %118 = arith.cmpi eq, %21, %117 : vector<8x128xi32>
    %119 = arith.extui %118 : vector<8x128xi1> to vector<8x128xi32>
    %120 = arith.sitofp %119 : vector<8x128xi32> to vector<8x128xf32>
    %c4 = arith.constant 4 : index
    %c0_65 = arith.constant 0 : index
    %c0_66 = arith.constant 0 : index
    %121 = vector.load %arg5[%c4, %c0_65, %c0_66] : memref<10x8x128xf32, #tpu.memory_space<vmem>>, vector<1x8x128xf32>
    %122 = vector.shape_cast %121 : vector<1x8x128xf32> to vector<8x128xf32>
    %123 = vector.shape_cast %120 : vector<8x128xf32> to vector<1x8x128xf32>
    %cst_67 = arith.constant dense<0.000000e+00> : vector<8x128xf32>
    %124 = vector.multi_reduction <add>, %123, %cst_67 [0] : vector<1x8x128xf32> to vector<8x128xf32>
    %125 = arith.addf %122, %124 : vector<8x128xf32>
    %c4_68 = arith.constant 4 : index
    %c0_69 = arith.constant 0 : index
    %c0_70 = arith.constant 0 : index
    %126 = vector.load %arg5[%c4_68, %c0_69, %c0_70] : memref<10x8x128xf32, #tpu.memory_space<vmem>>, vector<1x8x128xf32>
    %127 = vector.shape_cast %126 : vector<1x8x128xf32> to vector<8x128xf32>
    %128 = vector.shape_cast %125 : vector<8x128xf32> to vector<1x8x128xf32>
    tpu.vector_store %arg5[%c4_68, %c0_69, %c0_70], %128 {strides = array<i32>} : memref<10x8x128xf32, #tpu.memory_space<vmem>>, vector<1x8x128xf32>,
    %c4_71 = arith.constant 4 : index
    %c0_72 = arith.constant 0 : index
    %c0_73 = arith.constant 0 : index
    %129 = vector.load %arg6[%c4_71, %c0_72, %c0_73] : memref<10x8x128xf32, #tpu.memory_space<vmem>>, vector<1x8x128xf32>
    %130 = vector.shape_cast %129 : vector<1x8x128xf32> to vector<8x128xf32>
    %131 = arith.mulf %120, %32 : vector<8x128xf32>
    %132 = vector.shape_cast %131 : vector<8x128xf32> to vector<1x8x128xf32>
    %cst_74 = arith.constant dense<0.000000e+00> : vector<8x128xf32>
    %133 = vector.multi_reduction <add>, %132, %cst_74 [0] : vector<1x8x128xf32> to vector<8x128xf32>
    %134 = arith.addf %130, %133 : vector<8x128xf32>
    %c4_75 = arith.constant 4 : index
    %c0_76 = arith.constant 0 : index
    %c0_77 = arith.constant 0 : index
    %135 = vector.load %arg6[%c4_75, %c0_76, %c0_77] : memref<10x8x128xf32, #tpu.memory_space<vmem>>, vector<1x8x128xf32>
    %136 = vector.shape_cast %135 : vector<1x8x128xf32> to vector<8x128xf32>
    %137 = vector.shape_cast %134 : vector<8x128xf32> to vector<1x8x128xf32>
    tpu.vector_store %arg6[%c4_75, %c0_76, %c0_77], %137 {strides = array<i32>} : memref<10x8x128xf32, #tpu.memory_space<vmem>>, vector<1x8x128xf32>,
    %c5_i32 = arith.constant 5 : i32
    %138 = vector.broadcast %c5_i32 : i32 to vector<8x128xi32>
    %139 = arith.cmpi eq, %21, %138 : vector<8x128xi32>
    %140 = arith.extui %139 : vector<8x128xi1> to vector<8x128xi32>
    %141 = arith.sitofp %140 : vector<8x128xi32> to vector<8x128xf32>
    %c5 = arith.constant 5 : index
    %c0_78 = arith.constant 0 : index
    %c0_79 = arith.constant 0 : index
    %142 = vector.load %arg5[%c5, %c0_78, %c0_79] : memref<10x8x128xf32, #tpu.memory_space<vmem>>, vector<1x8x128xf32>
    %143 = vector.shape_cast %142 : vector<1x8x128xf32> to vector<8x128xf32>
    %144 = vector.shape_cast %141 : vector<8x128xf32> to vector<1x8x128xf32>
    %cst_80 = arith.constant dense<0.000000e+00> : vector<8x128xf32>
    %145 = vector.multi_reduction <add>, %144, %cst_80 [0] : vector<1x8x128xf32> to vector<8x128xf32>
    %146 = arith.addf %143, %145 : vector<8x128xf32>
    %c5_81 = arith.constant 5 : index
    %c0_82 = arith.constant 0 : index
    %c0_83 = arith.constant 0 : index
    %147 = vector.load %arg5[%c5_81, %c0_82, %c0_83] : memref<10x8x128xf32, #tpu.memory_space<vmem>>, vector<1x8x128xf32>
    %148 = vector.shape_cast %147 : vector<1x8x128xf32> to vector<8x128xf32>
    %149 = vector.shape_cast %146 : vector<8x128xf32> to vector<1x8x128xf32>
    tpu.vector_store %arg5[%c5_81, %c0_82, %c0_83], %149 {strides = array<i32>} : memref<10x8x128xf32, #tpu.memory_space<vmem>>, vector<1x8x128xf32>,
    %c5_84 = arith.constant 5 : index
    %c0_85 = arith.constant 0 : index
    %c0_86 = arith.constant 0 : index
    %150 = vector.load %arg6[%c5_84, %c0_85, %c0_86] : memref<10x8x128xf32, #tpu.memory_space<vmem>>, vector<1x8x128xf32>
    %151 = vector.shape_cast %150 : vector<1x8x128xf32> to vector<8x128xf32>
    %152 = arith.mulf %141, %32 : vector<8x128xf32>
    %153 = vector.shape_cast %152 : vector<8x128xf32> to vector<1x8x128xf32>
    %cst_87 = arith.constant dense<0.000000e+00> : vector<8x128xf32>
    %154 = vector.multi_reduction <add>, %153, %cst_87 [0] : vector<1x8x128xf32> to vector<8x128xf32>
    %155 = arith.addf %151, %154 : vector<8x128xf32>
    %c5_88 = arith.constant 5 : index
    %c0_89 = arith.constant 0 : index
    %c0_90 = arith.constant 0 : index
    %156 = vector.load %arg6[%c5_88, %c0_89, %c0_90] : memref<10x8x128xf32, #tpu.memory_space<vmem>>, vector<1x8x128xf32>
    %157 = vector.shape_cast %156 : vector<1x8x128xf32> to vector<8x128xf32>
    %158 = vector.shape_cast %155 : vector<8x128xf32> to vector<1x8x128xf32>
    tpu.vector_store %arg6[%c5_88, %c0_89, %c0_90], %158 {strides = array<i32>} : memref<10x8x128xf32, #tpu.memory_space<vmem>>, vector<1x8x128xf32>,
    %c6_i32 = arith.constant 6 : i32
    %159 = vector.broadcast %c6_i32 : i32 to vector<8x128xi32>
    %160 = arith.cmpi eq, %21, %159 : vector<8x128xi32>
    %161 = arith.extui %160 : vector<8x128xi1> to vector<8x128xi32>
    %162 = arith.sitofp %161 : vector<8x128xi32> to vector<8x128xf32>
    %c6 = arith.constant 6 : index
    %c0_91 = arith.constant 0 : index
    %c0_92 = arith.constant 0 : index
    %163 = vector.load %arg5[%c6, %c0_91, %c0_92] : memref<10x8x128xf32, #tpu.memory_space<vmem>>, vector<1x8x128xf32>
    %164 = vector.shape_cast %163 : vector<1x8x128xf32> to vector<8x128xf32>
    %165 = vector.shape_cast %162 : vector<8x128xf32> to vector<1x8x128xf32>
    %cst_93 = arith.constant dense<0.000000e+00> : vector<8x128xf32>
    %166 = vector.multi_reduction <add>, %165, %cst_93 [0] : vector<1x8x128xf32> to vector<8x128xf32>
    %167 = arith.addf %164, %166 : vector<8x128xf32>
    %c6_94 = arith.constant 6 : index
    %c0_95 = arith.constant 0 : index
    %c0_96 = arith.constant 0 : index
    %168 = vector.load %arg5[%c6_94, %c0_95, %c0_96] : memref<10x8x128xf32, #tpu.memory_space<vmem>>, vector<1x8x128xf32>
    %169 = vector.shape_cast %168 : vector<1x8x128xf32> to vector<8x128xf32>
    %170 = vector.shape_cast %167 : vector<8x128xf32> to vector<1x8x128xf32>
    tpu.vector_store %arg5[%c6_94, %c0_95, %c0_96], %170 {strides = array<i32>} : memref<10x8x128xf32, #tpu.memory_space<vmem>>, vector<1x8x128xf32>,
    %c6_97 = arith.constant 6 : index
    %c0_98 = arith.constant 0 : index
    %c0_99 = arith.constant 0 : index
    %171 = vector.load %arg6[%c6_97, %c0_98, %c0_99] : memref<10x8x128xf32, #tpu.memory_space<vmem>>, vector<1x8x128xf32>
    %172 = vector.shape_cast %171 : vector<1x8x128xf32> to vector<8x128xf32>
    %173 = arith.mulf %162, %32 : vector<8x128xf32>
    %174 = vector.shape_cast %173 : vector<8x128xf32> to vector<1x8x128xf32>
    %cst_100 = arith.constant dense<0.000000e+00> : vector<8x128xf32>
    %175 = vector.multi_reduction <add>, %174, %cst_100 [0] : vector<1x8x128xf32> to vector<8x128xf32>
    %176 = arith.addf %172, %175 : vector<8x128xf32>
    %c6_101 = arith.constant 6 : index
    %c0_102 = arith.constant 0 : index
    %c0_103 = arith.constant 0 : index
    %177 = vector.load %arg6[%c6_101, %c0_102, %c0_103] : memref<10x8x128xf32, #tpu.memory_space<vmem>>, vector<1x8x128xf32>
    %178 = vector.shape_cast %177 : vector<1x8x128xf32> to vector<8x128xf32>
    %179 = vector.shape_cast %176 : vector<8x128xf32> to vector<1x8x128xf32>
    tpu.vector_store %arg6[%c6_101, %c0_102, %c0_103], %179 {strides = array<i32>} : memref<10x8x128xf32, #tpu.memory_space<vmem>>, vector<1x8x128xf32>,
    %c7_i32 = arith.constant 7 : i32
    %180 = vector.broadcast %c7_i32 : i32 to vector<8x128xi32>
    %181 = arith.cmpi eq, %21, %180 : vector<8x128xi32>
    %182 = arith.extui %181 : vector<8x128xi1> to vector<8x128xi32>
    %183 = arith.sitofp %182 : vector<8x128xi32> to vector<8x128xf32>
    %c7 = arith.constant 7 : index
    %c0_104 = arith.constant 0 : index
    %c0_105 = arith.constant 0 : index
    %184 = vector.load %arg5[%c7, %c0_104, %c0_105] : memref<10x8x128xf32, #tpu.memory_space<vmem>>, vector<1x8x128xf32>
    %185 = vector.shape_cast %184 : vector<1x8x128xf32> to vector<8x128xf32>
    %186 = vector.shape_cast %183 : vector<8x128xf32> to vector<1x8x128xf32>
    %cst_106 = arith.constant dense<0.000000e+00> : vector<8x128xf32>
    %187 = vector.multi_reduction <add>, %186, %cst_106 [0] : vector<1x8x128xf32> to vector<8x128xf32>
    %188 = arith.addf %185, %187 : vector<8x128xf32>
    %c7_107 = arith.constant 7 : index
    %c0_108 = arith.constant 0 : index
    %c0_109 = arith.constant 0 : index
    %189 = vector.load %arg5[%c7_107, %c0_108, %c0_109] : memref<10x8x128xf32, #tpu.memory_space<vmem>>, vector<1x8x128xf32>
    %190 = vector.shape_cast %189 : vector<1x8x128xf32> to vector<8x128xf32>
    %191 = vector.shape_cast %188 : vector<8x128xf32> to vector<1x8x128xf32>
    tpu.vector_store %arg5[%c7_107, %c0_108, %c0_109], %191 {strides = array<i32>} : memref<10x8x128xf32, #tpu.memory_space<vmem>>, vector<1x8x128xf32>,
    %c7_110 = arith.constant 7 : index
    %c0_111 = arith.constant 0 : index
    %c0_112 = arith.constant 0 : index
    %192 = vector.load %arg6[%c7_110, %c0_111, %c0_112] : memref<10x8x128xf32, #tpu.memory_space<vmem>>, vector<1x8x128xf32>
    %193 = vector.shape_cast %192 : vector<1x8x128xf32> to vector<8x128xf32>
    %194 = arith.mulf %183, %32 : vector<8x128xf32>
    %195 = vector.shape_cast %194 : vector<8x128xf32> to vector<1x8x128xf32>
    %cst_113 = arith.constant dense<0.000000e+00> : vector<8x128xf32>
    %196 = vector.multi_reduction <add>, %195, %cst_113 [0] : vector<1x8x128xf32> to vector<8x128xf32>
    %197 = arith.addf %193, %196 : vector<8x128xf32>
    %c7_114 = arith.constant 7 : index
    %c0_115 = arith.constant 0 : index
    %c0_116 = arith.constant 0 : index
    %198 = vector.load %arg6[%c7_114, %c0_115, %c0_116] : memref<10x8x128xf32, #tpu.memory_space<vmem>>, vector<1x8x128xf32>
    %199 = vector.shape_cast %198 : vector<1x8x128xf32> to vector<8x128xf32>
    %200 = vector.shape_cast %197 : vector<8x128xf32> to vector<1x8x128xf32>
    tpu.vector_store %arg6[%c7_114, %c0_115, %c0_116], %200 {strides = array<i32>} : memref<10x8x128xf32, #tpu.memory_space<vmem>>, vector<1x8x128xf32>,
    %c8_i32 = arith.constant 8 : i32
    %201 = vector.broadcast %c8_i32 : i32 to vector<8x128xi32>
    %202 = arith.cmpi eq, %21, %201 : vector<8x128xi32>
    %203 = arith.extui %202 : vector<8x128xi1> to vector<8x128xi32>
    %204 = arith.sitofp %203 : vector<8x128xi32> to vector<8x128xf32>
    %c8 = arith.constant 8 : index
    %c0_117 = arith.constant 0 : index
    %c0_118 = arith.constant 0 : index
    %205 = vector.load %arg5[%c8, %c0_117, %c0_118] : memref<10x8x128xf32, #tpu.memory_space<vmem>>, vector<1x8x128xf32>
    %206 = vector.shape_cast %205 : vector<1x8x128xf32> to vector<8x128xf32>
    %207 = vector.shape_cast %204 : vector<8x128xf32> to vector<1x8x128xf32>
    %cst_119 = arith.constant dense<0.000000e+00> : vector<8x128xf32>
    %208 = vector.multi_reduction <add>, %207, %cst_119 [0] : vector<1x8x128xf32> to vector<8x128xf32>
    %209 = arith.addf %206, %208 : vector<8x128xf32>
    %c8_120 = arith.constant 8 : index
    %c0_121 = arith.constant 0 : index
    %c0_122 = arith.constant 0 : index
    %210 = vector.load %arg5[%c8_120, %c0_121, %c0_122] : memref<10x8x128xf32, #tpu.memory_space<vmem>>, vector<1x8x128xf32>
    %211 = vector.shape_cast %210 : vector<1x8x128xf32> to vector<8x128xf32>
    %212 = vector.shape_cast %209 : vector<8x128xf32> to vector<1x8x128xf32>
    tpu.vector_store %arg5[%c8_120, %c0_121, %c0_122], %212 {strides = array<i32>} : memref<10x8x128xf32, #tpu.memory_space<vmem>>, vector<1x8x128xf32>,
    %c8_123 = arith.constant 8 : index
    %c0_124 = arith.constant 0 : index
    %c0_125 = arith.constant 0 : index
    %213 = vector.load %arg6[%c8_123, %c0_124, %c0_125] : memref<10x8x128xf32, #tpu.memory_space<vmem>>, vector<1x8x128xf32>
    %214 = vector.shape_cast %213 : vector<1x8x128xf32> to vector<8x128xf32>
    %215 = arith.mulf %204, %32 : vector<8x128xf32>
    %216 = vector.shape_cast %215 : vector<8x128xf32> to vector<1x8x128xf32>
    %cst_126 = arith.constant dense<0.000000e+00> : vector<8x128xf32>
    %217 = vector.multi_reduction <add>, %216, %cst_126 [0] : vector<1x8x128xf32> to vector<8x128xf32>
    %218 = arith.addf %214, %217 : vector<8x128xf32>
    %c8_127 = arith.constant 8 : index
    %c0_128 = arith.constant 0 : index
    %c0_129 = arith.constant 0 : index
    %219 = vector.load %arg6[%c8_127, %c0_128, %c0_129] : memref<10x8x128xf32, #tpu.memory_space<vmem>>, vector<1x8x128xf32>
    %220 = vector.shape_cast %219 : vector<1x8x128xf32> to vector<8x128xf32>
    %221 = vector.shape_cast %218 : vector<8x128xf32> to vector<1x8x128xf32>
    tpu.vector_store %arg6[%c8_127, %c0_128, %c0_129], %221 {strides = array<i32>} : memref<10x8x128xf32, #tpu.memory_space<vmem>>, vector<1x8x128xf32>,
    %c9_i32_130 = arith.constant 9 : i32
    %222 = vector.broadcast %c9_i32_130 : i32 to vector<8x128xi32>
    %223 = arith.cmpi eq, %21, %222 : vector<8x128xi32>
    %224 = arith.extui %223 : vector<8x128xi1> to vector<8x128xi32>
    %225 = arith.sitofp %224 : vector<8x128xi32> to vector<8x128xf32>
    %c9 = arith.constant 9 : index
    %c0_131 = arith.constant 0 : index
    %c0_132 = arith.constant 0 : index
    %226 = vector.load %arg5[%c9, %c0_131, %c0_132] : memref<10x8x128xf32, #tpu.memory_space<vmem>>, vector<1x8x128xf32>
    %227 = vector.shape_cast %226 : vector<1x8x128xf32> to vector<8x128xf32>
    %228 = vector.shape_cast %225 : vector<8x128xf32> to vector<1x8x128xf32>
    %cst_133 = arith.constant dense<0.000000e+00> : vector<8x128xf32>
    %229 = vector.multi_reduction <add>, %228, %cst_133 [0] : vector<1x8x128xf32> to vector<8x128xf32>
    %230 = arith.addf %227, %229 : vector<8x128xf32>
    %c9_134 = arith.constant 9 : index
    %c0_135 = arith.constant 0 : index
    %c0_136 = arith.constant 0 : index
    %231 = vector.load %arg5[%c9_134, %c0_135, %c0_136] : memref<10x8x128xf32, #tpu.memory_space<vmem>>, vector<1x8x128xf32>
    %232 = vector.shape_cast %231 : vector<1x8x128xf32> to vector<8x128xf32>
    %233 = vector.shape_cast %230 : vector<8x128xf32> to vector<1x8x128xf32>
    tpu.vector_store %arg5[%c9_134, %c0_135, %c0_136], %233 {strides = array<i32>} : memref<10x8x128xf32, #tpu.memory_space<vmem>>, vector<1x8x128xf32>,
    %c9_137 = arith.constant 9 : index
    %c0_138 = arith.constant 0 : index
    %c0_139 = arith.constant 0 : index
    %234 = vector.load %arg6[%c9_137, %c0_138, %c0_139] : memref<10x8x128xf32, #tpu.memory_space<vmem>>, vector<1x8x128xf32>
    %235 = vector.shape_cast %234 : vector<1x8x128xf32> to vector<8x128xf32>
    %236 = arith.mulf %225, %32 : vector<8x128xf32>
    %237 = vector.shape_cast %236 : vector<8x128xf32> to vector<1x8x128xf32>
    %cst_140 = arith.constant dense<0.000000e+00> : vector<8x128xf32>
    %238 = vector.multi_reduction <add>, %237, %cst_140 [0] : vector<1x8x128xf32> to vector<8x128xf32>
    %239 = arith.addf %235, %238 : vector<8x128xf32>
    %c9_141 = arith.constant 9 : index
    %c0_142 = arith.constant 0 : index
    %c0_143 = arith.constant 0 : index
    %240 = vector.load %arg6[%c9_141, %c0_142, %c0_143] : memref<10x8x128xf32, #tpu.memory_space<vmem>>, vector<1x8x128xf32>
    %241 = vector.shape_cast %240 : vector<1x8x128xf32> to vector<8x128xf32>
    %242 = vector.shape_cast %239 : vector<8x128xf32> to vector<1x8x128xf32>
    tpu.vector_store %arg6[%c9_141, %c0_142, %c0_143], %242 {strides = array<i32>} : memref<10x8x128xf32, #tpu.memory_space<vmem>>, vector<1x8x128xf32>,
    %c0_i32_144 = arith.constant 0 : i32
    %243 = arith.cmpi eq, %arg0, %c0_i32_144 : i32
    %244 = arith.extui %243 : i1 to i32
    %c0_i32_145 = arith.constant 0 : i32
    %245 = arith.cmpi ne, %244, %c0_i32_145 : i32
    scf.if %245 {
      %c0_146 = arith.constant 0 : index
      %c0_147 = arith.constant 0 : index
      %c0_148 = arith.constant 0 : index
      %246 = vector.load %arg5[%c0_146, %c0_147, %c0_148] : memref<10x8x128xf32, #tpu.memory_space<vmem>>, vector<1x8x128xf32>
      %247 = vector.shape_cast %246 : vector<1x8x128xf32> to vector<8x128xf32>
      %248 = vector.shape_cast %247 : vector<8x128xf32> to vector<1x8x128xf32>
      %cst_149 = arith.constant dense<0.000000e+00> : vector<1xf32>
      %249 = vector.multi_reduction <add>, %248, %cst_149 [1, 2] : vector<1x8x128xf32> to vector<1xf32>
      %250 = vector.shape_cast %249 : vector<1xf32> to vector<1x1x1xf32>
      %251 = vector.extract %250[0, 0, 0] : f32 from vector<1x1x1xf32>
      %c0_150 = arith.constant 0 : index
      %c0_151 = arith.constant 0 : index
      %c0_152 = arith.constant 0 : index
      %252 = vector.load %arg6[%c0_150, %c0_151, %c0_152] : memref<10x8x128xf32, #tpu.memory_space<vmem>>, vector<1x8x128xf32>
      %253 = vector.shape_cast %252 : vector<1x8x128xf32> to vector<8x128xf32>
      %254 = vector.shape_cast %253 : vector<8x128xf32> to vector<1x8x128xf32>
      %cst_153 = arith.constant dense<0.000000e+00> : vector<1xf32>
      %255 = vector.multi_reduction <add>, %254, %cst_153 [1, 2] : vector<1x8x128xf32> to vector<1xf32>
      %256 = vector.shape_cast %255 : vector<1xf32> to vector<1x1x1xf32>
      %257 = vector.extract %256[0, 0, 0] : f32 from vector<1x1x1xf32>
      %cst_154 = arith.constant 0.000000e+00 : f32
      %258 = arith.cmpf ogt, %251, %cst_154 : f32
      %cst_155 = arith.constant 1.000000e+00 : f32
      %259 = arith.maximumf %251, %cst_155 : f32
      %260 = arith.divf %257, %259 : f32
      %cst_156 = arith.constant 0.000000e+00 : f32
      %261 = arith.select %258, %260, %cst_156 : f32
      %cst_157 = arith.constant 0.000000e+00 : f32
      %262 = arith.addf %cst_157, %261 : f32
      %cst_158 = arith.constant 1.000000e+00 : f32
      %cst_159 = arith.constant 0.000000e+00 : f32
      %263 = arith.select %258, %cst_158, %cst_159 : f32
      %cst_160 = arith.constant 0.000000e+00 : f32
      %264 = arith.addf %cst_160, %263 : f32
      %c1_161 = arith.constant 1 : index
      %c0_162 = arith.constant 0 : index
      %c0_163 = arith.constant 0 : index
      %265 = vector.load %arg5[%c1_161, %c0_162, %c0_163] : memref<10x8x128xf32, #tpu.memory_space<vmem>>, vector<1x8x128xf32>
      %266 = vector.shape_cast %265 : vector<1x8x128xf32> to vector<8x128xf32>
      %267 = vector.shape_cast %266 : vector<8x128xf32> to vector<1x8x128xf32>
      %cst_164 = arith.constant dense<0.000000e+00> : vector<1xf32>
      %268 = vector.multi_reduction <add>, %267, %cst_164 [1, 2] : vector<1x8x128xf32> to vector<1xf32>
      %269 = vector.shape_cast %268 : vector<1xf32> to vector<1x1x1xf32>
      %270 = vector.extract %269[0, 0, 0] : f32 from vector<1x1x1xf32>
      %c1_165 = arith.constant 1 : index
      %c0_166 = arith.constant 0 : index
      %c0_167 = arith.constant 0 : index
      %271 = vector.load %arg6[%c1_165, %c0_166, %c0_167] : memref<10x8x128xf32, #tpu.memory_space<vmem>>, vector<1x8x128xf32>
      %272 = vector.shape_cast %271 : vector<1x8x128xf32> to vector<8x128xf32>
      %273 = vector.shape_cast %272 : vector<8x128xf32> to vector<1x8x128xf32>
      %cst_168 = arith.constant dense<0.000000e+00> : vector<1xf32>
      %274 = vector.multi_reduction <add>, %273, %cst_168 [1, 2] : vector<1x8x128xf32> to vector<1xf32>
      %275 = vector.shape_cast %274 : vector<1xf32> to vector<1x1x1xf32>
      %276 = vector.extract %275[0, 0, 0] : f32 from vector<1x1x1xf32>
      %cst_169 = arith.constant 0.000000e+00 : f32
      %277 = arith.cmpf ogt, %270, %cst_169 : f32
      %cst_170 = arith.constant 1.000000e+00 : f32
      %278 = arith.maximumf %270, %cst_170 : f32
      %279 = arith.divf %276, %278 : f32
      %cst_171 = arith.constant 0.000000e+00 : f32
      %280 = arith.select %277, %279, %cst_171 : f32
      %281 = arith.addf %262, %280 : f32
      %cst_172 = arith.constant 1.000000e+00 : f32
      %cst_173 = arith.constant 0.000000e+00 : f32
      %282 = arith.select %277, %cst_172, %cst_173 : f32
      %283 = arith.addf %264, %282 : f32
      %c2_174 = arith.constant 2 : index
      %c0_175 = arith.constant 0 : index
      %c0_176 = arith.constant 0 : index
      %284 = vector.load %arg5[%c2_174, %c0_175, %c0_176] : memref<10x8x128xf32, #tpu.memory_space<vmem>>, vector<1x8x128xf32>
      %285 = vector.shape_cast %284 : vector<1x8x128xf32> to vector<8x128xf32>
      %286 = vector.shape_cast %285 : vector<8x128xf32> to vector<1x8x128xf32>
      %cst_177 = arith.constant dense<0.000000e+00> : vector<1xf32>
      %287 = vector.multi_reduction <add>, %286, %cst_177 [1, 2] : vector<1x8x128xf32> to vector<1xf32>
      %288 = vector.shape_cast %287 : vector<1xf32> to vector<1x1x1xf32>
      %289 = vector.extract %288[0, 0, 0] : f32 from vector<1x1x1xf32>
      %c2_178 = arith.constant 2 : index
      %c0_179 = arith.constant 0 : index
      %c0_180 = arith.constant 0 : index
      %290 = vector.load %arg6[%c2_178, %c0_179, %c0_180] : memref<10x8x128xf32, #tpu.memory_space<vmem>>, vector<1x8x128xf32>
      %291 = vector.shape_cast %290 : vector<1x8x128xf32> to vector<8x128xf32>
      %292 = vector.shape_cast %291 : vector<8x128xf32> to vector<1x8x128xf32>
      %cst_181 = arith.constant dense<0.000000e+00> : vector<1xf32>
      %293 = vector.multi_reduction <add>, %292, %cst_181 [1, 2] : vector<1x8x128xf32> to vector<1xf32>
      %294 = vector.shape_cast %293 : vector<1xf32> to vector<1x1x1xf32>
      %295 = vector.extract %294[0, 0, 0] : f32 from vector<1x1x1xf32>
      %cst_182 = arith.constant 0.000000e+00 : f32
      %296 = arith.cmpf ogt, %289, %cst_182 : f32
      %cst_183 = arith.constant 1.000000e+00 : f32
      %297 = arith.maximumf %289, %cst_183 : f32
      %298 = arith.divf %295, %297 : f32
      %cst_184 = arith.constant 0.000000e+00 : f32
      %299 = arith.select %296, %298, %cst_184 : f32
      %300 = arith.addf %281, %299 : f32
      %cst_185 = arith.constant 1.000000e+00 : f32
      %cst_186 = arith.constant 0.000000e+00 : f32
      %301 = arith.select %296, %cst_185, %cst_186 : f32
      %302 = arith.addf %283, %301 : f32
      %c3_187 = arith.constant 3 : index
      %c0_188 = arith.constant 0 : index
      %c0_189 = arith.constant 0 : index
      %303 = vector.load %arg5[%c3_187, %c0_188, %c0_189] : memref<10x8x128xf32, #tpu.memory_space<vmem>>, vector<1x8x128xf32>
      %304 = vector.shape_cast %303 : vector<1x8x128xf32> to vector<8x128xf32>
      %305 = vector.shape_cast %304 : vector<8x128xf32> to vector<1x8x128xf32>
      %cst_190 = arith.constant dense<0.000000e+00> : vector<1xf32>
      %306 = vector.multi_reduction <add>, %305, %cst_190 [1, 2] : vector<1x8x128xf32> to vector<1xf32>
      %307 = vector.shape_cast %306 : vector<1xf32> to vector<1x1x1xf32>
      %308 = vector.extract %307[0, 0, 0] : f32 from vector<1x1x1xf32>
      %c3_191 = arith.constant 3 : index
      %c0_192 = arith.constant 0 : index
      %c0_193 = arith.constant 0 : index
      %309 = vector.load %arg6[%c3_191, %c0_192, %c0_193] : memref<10x8x128xf32, #tpu.memory_space<vmem>>, vector<1x8x128xf32>
      %310 = vector.shape_cast %309 : vector<1x8x128xf32> to vector<8x128xf32>
      %311 = vector.shape_cast %310 : vector<8x128xf32> to vector<1x8x128xf32>
      %cst_194 = arith.constant dense<0.000000e+00> : vector<1xf32>
      %312 = vector.multi_reduction <add>, %311, %cst_194 [1, 2] : vector<1x8x128xf32> to vector<1xf32>
      %313 = vector.shape_cast %312 : vector<1xf32> to vector<1x1x1xf32>
      %314 = vector.extract %313[0, 0, 0] : f32 from vector<1x1x1xf32>
      %cst_195 = arith.constant 0.000000e+00 : f32
      %315 = arith.cmpf ogt, %308, %cst_195 : f32
      %cst_196 = arith.constant 1.000000e+00 : f32
      %316 = arith.maximumf %308, %cst_196 : f32
      %317 = arith.divf %314, %316 : f32
      %cst_197 = arith.constant 0.000000e+00 : f32
      %318 = arith.select %315, %317, %cst_197 : f32
      %319 = arith.addf %300, %318 : f32
      %cst_198 = arith.constant 1.000000e+00 : f32
      %cst_199 = arith.constant 0.000000e+00 : f32
      %320 = arith.select %315, %cst_198, %cst_199 : f32
      %321 = arith.addf %302, %320 : f32
      %c4_200 = arith.constant 4 : index
      %c0_201 = arith.constant 0 : index
      %c0_202 = arith.constant 0 : index
      %322 = vector.load %arg5[%c4_200, %c0_201, %c0_202] : memref<10x8x128xf32, #tpu.memory_space<vmem>>, vector<1x8x128xf32>
      %323 = vector.shape_cast %322 : vector<1x8x128xf32> to vector<8x128xf32>
      %324 = vector.shape_cast %323 : vector<8x128xf32> to vector<1x8x128xf32>
      %cst_203 = arith.constant dense<0.000000e+00> : vector<1xf32>
      %325 = vector.multi_reduction <add>, %324, %cst_203 [1, 2] : vector<1x8x128xf32> to vector<1xf32>
      %326 = vector.shape_cast %325 : vector<1xf32> to vector<1x1x1xf32>
      %327 = vector.extract %326[0, 0, 0] : f32 from vector<1x1x1xf32>
      %c4_204 = arith.constant 4 : index
      %c0_205 = arith.constant 0 : index
      %c0_206 = arith.constant 0 : index
      %328 = vector.load %arg6[%c4_204, %c0_205, %c0_206] : memref<10x8x128xf32, #tpu.memory_space<vmem>>, vector<1x8x128xf32>
      %329 = vector.shape_cast %328 : vector<1x8x128xf32> to vector<8x128xf32>
      %330 = vector.shape_cast %329 : vector<8x128xf32> to vector<1x8x128xf32>
      %cst_207 = arith.constant dense<0.000000e+00> : vector<1xf32>
      %331 = vector.multi_reduction <add>, %330, %cst_207 [1, 2] : vector<1x8x128xf32> to vector<1xf32>
      %332 = vector.shape_cast %331 : vector<1xf32> to vector<1x1x1xf32>
      %333 = vector.extract %332[0, 0, 0] : f32 from vector<1x1x1xf32>
      %cst_208 = arith.constant 0.000000e+00 : f32
      %334 = arith.cmpf ogt, %327, %cst_208 : f32
      %cst_209 = arith.constant 1.000000e+00 : f32
      %335 = arith.maximumf %327, %cst_209 : f32
      %336 = arith.divf %333, %335 : f32
      %cst_210 = arith.constant 0.000000e+00 : f32
      %337 = arith.select %334, %336, %cst_210 : f32
      %338 = arith.addf %319, %337 : f32
      %cst_211 = arith.constant 1.000000e+00 : f32
      %cst_212 = arith.constant 0.000000e+00 : f32
      %339 = arith.select %334, %cst_211, %cst_212 : f32
      %340 = arith.addf %321, %339 : f32
      %c5_213 = arith.constant 5 : index
      %c0_214 = arith.constant 0 : index
      %c0_215 = arith.constant 0 : index
      %341 = vector.load %arg5[%c5_213, %c0_214, %c0_215] : memref<10x8x128xf32, #tpu.memory_space<vmem>>, vector<1x8x128xf32>
      %342 = vector.shape_cast %341 : vector<1x8x128xf32> to vector<8x128xf32>
      %343 = vector.shape_cast %342 : vector<8x128xf32> to vector<1x8x128xf32>
      %cst_216 = arith.constant dense<0.000000e+00> : vector<1xf32>
      %344 = vector.multi_reduction <add>, %343, %cst_216 [1, 2] : vector<1x8x128xf32> to vector<1xf32>
      %345 = vector.shape_cast %344 : vector<1xf32> to vector<1x1x1xf32>
      %346 = vector.extract %345[0, 0, 0] : f32 from vector<1x1x1xf32>
      %c5_217 = arith.constant 5 : index
      %c0_218 = arith.constant 0 : index
      %c0_219 = arith.constant 0 : index
      %347 = vector.load %arg6[%c5_217, %c0_218, %c0_219] : memref<10x8x128xf32, #tpu.memory_space<vmem>>, vector<1x8x128xf32>
      %348 = vector.shape_cast %347 : vector<1x8x128xf32> to vector<8x128xf32>
      %349 = vector.shape_cast %348 : vector<8x128xf32> to vector<1x8x128xf32>
      %cst_220 = arith.constant dense<0.000000e+00> : vector<1xf32>
      %350 = vector.multi_reduction <add>, %349, %cst_220 [1, 2] : vector<1x8x128xf32> to vector<1xf32>
      %351 = vector.shape_cast %350 : vector<1xf32> to vector<1x1x1xf32>
      %352 = vector.extract %351[0, 0, 0] : f32 from vector<1x1x1xf32>
      %cst_221 = arith.constant 0.000000e+00 : f32
      %353 = arith.cmpf ogt, %346, %cst_221 : f32
      %cst_222 = arith.constant 1.000000e+00 : f32
      %354 = arith.maximumf %346, %cst_222 : f32
      %355 = arith.divf %352, %354 : f32
      %cst_223 = arith.constant 0.000000e+00 : f32
      %356 = arith.select %353, %355, %cst_223 : f32
      %357 = arith.addf %338, %356 : f32
      %cst_224 = arith.constant 1.000000e+00 : f32
      %cst_225 = arith.constant 0.000000e+00 : f32
      %358 = arith.select %353, %cst_224, %cst_225 : f32
      %359 = arith.addf %340, %358 : f32
      %c6_226 = arith.constant 6 : index
      %c0_227 = arith.constant 0 : index
      %c0_228 = arith.constant 0 : index
      %360 = vector.load %arg5[%c6_226, %c0_227, %c0_228] : memref<10x8x128xf32, #tpu.memory_space<vmem>>, vector<1x8x128xf32>
      %361 = vector.shape_cast %360 : vector<1x8x128xf32> to vector<8x128xf32>
      %362 = vector.shape_cast %361 : vector<8x128xf32> to vector<1x8x128xf32>
      %cst_229 = arith.constant dense<0.000000e+00> : vector<1xf32>
      %363 = vector.multi_reduction <add>, %362, %cst_229 [1, 2] : vector<1x8x128xf32> to vector<1xf32>
      %364 = vector.shape_cast %363 : vector<1xf32> to vector<1x1x1xf32>
      %365 = vector.extract %364[0, 0, 0] : f32 from vector<1x1x1xf32>
      %c6_230 = arith.constant 6 : index
      %c0_231 = arith.constant 0 : index
      %c0_232 = arith.constant 0 : index
      %366 = vector.load %arg6[%c6_230, %c0_231, %c0_232] : memref<10x8x128xf32, #tpu.memory_space<vmem>>, vector<1x8x128xf32>
      %367 = vector.shape_cast %366 : vector<1x8x128xf32> to vector<8x128xf32>
      %368 = vector.shape_cast %367 : vector<8x128xf32> to vector<1x8x128xf32>
      %cst_233 = arith.constant dense<0.000000e+00> : vector<1xf32>
      %369 = vector.multi_reduction <add>, %368, %cst_233 [1, 2] : vector<1x8x128xf32> to vector<1xf32>
      %370 = vector.shape_cast %369 : vector<1xf32> to vector<1x1x1xf32>
      %371 = vector.extract %370[0, 0, 0] : f32 from vector<1x1x1xf32>
      %cst_234 = arith.constant 0.000000e+00 : f32
      %372 = arith.cmpf ogt, %365, %cst_234 : f32
      %cst_235 = arith.constant 1.000000e+00 : f32
      %373 = arith.maximumf %365, %cst_235 : f32
      %374 = arith.divf %371, %373 : f32
      %cst_236 = arith.constant 0.000000e+00 : f32
      %375 = arith.select %372, %374, %cst_236 : f32
      %376 = arith.addf %357, %375 : f32
      %cst_237 = arith.constant 1.000000e+00 : f32
      %cst_238 = arith.constant 0.000000e+00 : f32
      %377 = arith.select %372, %cst_237, %cst_238 : f32
      %378 = arith.addf %359, %377 : f32
      %c7_239 = arith.constant 7 : index
      %c0_240 = arith.constant 0 : index
      %c0_241 = arith.constant 0 : index
      %379 = vector.load %arg5[%c7_239, %c0_240, %c0_241] : memref<10x8x128xf32, #tpu.memory_space<vmem>>, vector<1x8x128xf32>
      %380 = vector.shape_cast %379 : vector<1x8x128xf32> to vector<8x128xf32>
      %381 = vector.shape_cast %380 : vector<8x128xf32> to vector<1x8x128xf32>
      %cst_242 = arith.constant dense<0.000000e+00> : vector<1xf32>
      %382 = vector.multi_reduction <add>, %381, %cst_242 [1, 2] : vector<1x8x128xf32> to vector<1xf32>
      %383 = vector.shape_cast %382 : vector<1xf32> to vector<1x1x1xf32>
      %384 = vector.extract %383[0, 0, 0] : f32 from vector<1x1x1xf32>
      %c7_243 = arith.constant 7 : index
      %c0_244 = arith.constant 0 : index
      %c0_245 = arith.constant 0 : index
      %385 = vector.load %arg6[%c7_243, %c0_244, %c0_245] : memref<10x8x128xf32, #tpu.memory_space<vmem>>, vector<1x8x128xf32>
      %386 = vector.shape_cast %385 : vector<1x8x128xf32> to vector<8x128xf32>
      %387 = vector.shape_cast %386 : vector<8x128xf32> to vector<1x8x128xf32>
      %cst_246 = arith.constant dense<0.000000e+00> : vector<1xf32>
      %388 = vector.multi_reduction <add>, %387, %cst_246 [1, 2] : vector<1x8x128xf32> to vector<1xf32>
      %389 = vector.shape_cast %388 : vector<1xf32> to vector<1x1x1xf32>
      %390 = vector.extract %389[0, 0, 0] : f32 from vector<1x1x1xf32>
      %cst_247 = arith.constant 0.000000e+00 : f32
      %391 = arith.cmpf ogt, %384, %cst_247 : f32
      %cst_248 = arith.constant 1.000000e+00 : f32
      %392 = arith.maximumf %384, %cst_248 : f32
      %393 = arith.divf %390, %392 : f32
      %cst_249 = arith.constant 0.000000e+00 : f32
      %394 = arith.select %391, %393, %cst_249 : f32
      %395 = arith.addf %376, %394 : f32
      %cst_250 = arith.constant 1.000000e+00 : f32
      %cst_251 = arith.constant 0.000000e+00 : f32
      %396 = arith.select %391, %cst_250, %cst_251 : f32
      %397 = arith.addf %378, %396 : f32
      %c8_252 = arith.constant 8 : index
      %c0_253 = arith.constant 0 : index
      %c0_254 = arith.constant 0 : index
      %398 = vector.load %arg5[%c8_252, %c0_253, %c0_254] : memref<10x8x128xf32, #tpu.memory_space<vmem>>, vector<1x8x128xf32>
      %399 = vector.shape_cast %398 : vector<1x8x128xf32> to vector<8x128xf32>
      %400 = vector.shape_cast %399 : vector<8x128xf32> to vector<1x8x128xf32>
      %cst_255 = arith.constant dense<0.000000e+00> : vector<1xf32>
      %401 = vector.multi_reduction <add>, %400, %cst_255 [1, 2] : vector<1x8x128xf32> to vector<1xf32>
      %402 = vector.shape_cast %401 : vector<1xf32> to vector<1x1x1xf32>
      %403 = vector.extract %402[0, 0, 0] : f32 from vector<1x1x1xf32>
      %c8_256 = arith.constant 8 : index
      %c0_257 = arith.constant 0 : index
      %c0_258 = arith.constant 0 : index
      %404 = vector.load %arg6[%c8_256, %c0_257, %c0_258] : memref<10x8x128xf32, #tpu.memory_space<vmem>>, vector<1x8x128xf32>
      %405 = vector.shape_cast %404 : vector<1x8x128xf32> to vector<8x128xf32>
      %406 = vector.shape_cast %405 : vector<8x128xf32> to vector<1x8x128xf32>
      %cst_259 = arith.constant dense<0.000000e+00> : vector<1xf32>
      %407 = vector.multi_reduction <add>, %406, %cst_259 [1, 2] : vector<1x8x128xf32> to vector<1xf32>
      %408 = vector.shape_cast %407 : vector<1xf32> to vector<1x1x1xf32>
      %409 = vector.extract %408[0, 0, 0] : f32 from vector<1x1x1xf32>
      %cst_260 = arith.constant 0.000000e+00 : f32
      %410 = arith.cmpf ogt, %403, %cst_260 : f32
      %cst_261 = arith.constant 1.000000e+00 : f32
      %411 = arith.maximumf %403, %cst_261 : f32
      %412 = arith.divf %409, %411 : f32
      %cst_262 = arith.constant 0.000000e+00 : f32
      %413 = arith.select %410, %412, %cst_262 : f32
      %414 = arith.addf %395, %413 : f32
      %cst_263 = arith.constant 1.000000e+00 : f32
      %cst_264 = arith.constant 0.000000e+00 : f32
      %415 = arith.select %410, %cst_263, %cst_264 : f32
      %416 = arith.addf %397, %415 : f32
      %c9_265 = arith.constant 9 : index
      %c0_266 = arith.constant 0 : index
      %c0_267 = arith.constant 0 : index
      %417 = vector.load %arg5[%c9_265, %c0_266, %c0_267] : memref<10x8x128xf32, #tpu.memory_space<vmem>>, vector<1x8x128xf32>
      %418 = vector.shape_cast %417 : vector<1x8x128xf32> to vector<8x128xf32>
      %419 = vector.shape_cast %418 : vector<8x128xf32> to vector<1x8x128xf32>
      %cst_268 = arith.constant dense<0.000000e+00> : vector<1xf32>
      %420 = vector.multi_reduction <add>, %419, %cst_268 [1, 2] : vector<1x8x128xf32> to vector<1xf32>
      %421 = vector.shape_cast %420 : vector<1xf32> to vector<1x1x1xf32>
      %422 = vector.extract %421[0, 0, 0] : f32 from vector<1x1x1xf32>
      %c9_269 = arith.constant 9 : index
      %c0_270 = arith.constant 0 : index
      %c0_271 = arith.constant 0 : index
      %423 = vector.load %arg6[%c9_269, %c0_270, %c0_271] : memref<10x8x128xf32, #tpu.memory_space<vmem>>, vector<1x8x128xf32>
      %424 = vector.shape_cast %423 : vector<1x8x128xf32> to vector<8x128xf32>
      %425 = vector.shape_cast %424 : vector<8x128xf32> to vector<1x8x128xf32>
      %cst_272 = arith.constant dense<0.000000e+00> : vector<1xf32>
      %426 = vector.multi_reduction <add>, %425, %cst_272 [1, 2] : vector<1x8x128xf32> to vector<1xf32>
      %427 = vector.shape_cast %426 : vector<1xf32> to vector<1x1x1xf32>
      %428 = vector.extract %427[0, 0, 0] : f32 from vector<1x1x1xf32>
      %cst_273 = arith.constant 0.000000e+00 : f32
      %429 = arith.cmpf ogt, %422, %cst_273 : f32
      %cst_274 = arith.constant 1.000000e+00 : f32
      %430 = arith.maximumf %422, %cst_274 : f32
      %431 = arith.divf %428, %430 : f32
      %cst_275 = arith.constant 0.000000e+00 : f32
      %432 = arith.select %429, %431, %cst_275 : f32
      %433 = arith.addf %414, %432 : f32
      %cst_276 = arith.constant 1.000000e+00 : f32
      %cst_277 = arith.constant 0.000000e+00 : f32
      %434 = arith.select %429, %cst_276, %cst_277 : f32
      %435 = arith.addf %416, %434 : f32
      %cst_278 = arith.constant 0.000000e+00 : f32
      %436 = arith.cmpf ogt, %435, %cst_278 : f32
      %437 = arith.divf %433, %435 : f32
      %cst_279 = arith.constant 0.000000e+00 : f32
      %438 = arith.select %436, %437, %cst_279 : f32
      %cst_280 = arith.constant 1.000000e+00 : f32
      %439 = arith.mulf %438, %cst_280 : f32
      %c0_281 = arith.constant 0 : index
      %440 = memref.load %arg4[%c0_281] : memref<1xf32, #tpu.memory_space<smem>>
      memref.store %439, %arg4[%c0_281] : memref<1xf32, #tpu.memory_space<smem>>
    } else {
    }
    return
  }
  func.func @transform_0(%arg0: i32) -> (i32, i32) {
    %c0_i32 = arith.constant 0 : i32
    %c0_i32_0 = arith.constant 0 : i32
    return %arg0, %c0_i32 : i32, i32
  }
  func.func @transform_1(%arg0: i32) -> (i32, i32) {
    %c0_i32 = arith.constant 0 : i32
    %c0_i32_0 = arith.constant 0 : i32
    return %arg0, %c0_i32 : i32, i32
  }
  func.func @transform_2(%arg0: i32) -> (i32, i32) {
    %c0_i32 = arith.constant 0 : i32
    %c0_i32_0 = arith.constant 0 : i32
    return %arg0, %c0_i32 : i32, i32
  }
  func.func @transform_3(%arg0: i32) -> i32 {
    %c0_i32 = arith.constant 0 : i32
    %c0_i32_0 = arith.constant 0 : i32
    return %c0_i32 : i32
  }
}

</mosaic_0001>

<llo_original>
// kernel: tpu_custom_call.1
$region0: #{tpu_custom_call.1}
  #allocation0 [shape = 'u32[]', space=smem, size = 0x4, offset = 0x4, fixed_abs, tag = 'smem constant byte address 0x4 - core index']
  #allocation1 [shape = 'u32[144,128]{1,0:T(1,128)}', space=vmem, size = 0x12000, scoped, tag = 'internal scratch']
  #allocation2 [shape = 'f32[10,8,128]{2,1,0:T(8,128)}', space=vmem, size = 0xa000, scoped, tag = 'scratch operand']
  #allocation3 [shape = 'f32[10,8,128]{2,1,0:T(8,128)}', space=vmem, size = 0xa000, scoped, tag = 'scratch operand']
  %s0 = inlined_call_operand.hbm [shape: f32[8,128], index: 0, kind: input, shape index: {}]
  %s1 = inlined_call_operand.hbm [shape: f32[8,128], index: 1, kind: input, shape index: {}]
  %s2 = inlined_call_operand.hbm [shape: f32[8,128], index: 2, kind: input, shape index: {}]
  %s3 = inlined_call_operand.hbm [shape: f32[1], index: 3, kind: output, shape index: {}]
  %s4 = sld [smem:[#allocation0]]
  $region42: #{tpu_custom_call.1} parent=0
    _
  %s6 = ssub.s32 1, %s4
  %s7 = scalar_select 0, %s6, %s4
  $region1: #{tpu_custom_call.1} parent=0
    #allocation4 [shape = 'u8[4096]{0}', space=vmem, size = 0x1000, scoped, tag = 'input window, operand 0, single buffered']
    #allocation5 [shape = 's32[1]{0}', space=sflag, size = 0x4, scoped, tag = 'scoped memory for tpu_custom_call.1']
    #allocation6 [shape = 's32[1]{0}', space=sflag, size = 0x4, scoped, tag = 'scoped memory for tpu_custom_call.1']
    #allocation7 [shape = 'u8[4096]{0}', space=vmem, size = 0x1000, scoped, tag = 'input window, operand 1, single buffered']
    #allocation8 [shape = 's32[1]{0}', space=sflag, size = 0x4, scoped, tag = 'scoped memory for tpu_custom_call.1']
    #allocation9 [shape = 'u8[4096]{0}', space=vmem, size = 0x1000, scoped, tag = 'input window, operand 2, single buffered']
    #allocation10 [shape = 'u8[512]{0}', space=smem, size = 0x200, scoped, tag = 'output window, operand 0, single buffered']
    %8 = vsyncpa [#allocation5], 0
    %9 = vsyncpa [#allocation8], 0
    %10 = vsyncpa [#allocation6], 0
    // Predicated region
    $region2: #{tpu_custom_call.1} parent=1 // pred_check
      _
    $region3: #{tpu_custom_call.1} parent=1 // pred_check_branch
      %12 = sbr.rel (0) target = $region5
    $region4: #{tpu_custom_call.1} parent=1 // pred_region
      %s14 = ssub.s32 128, 128
      %15 = vsyncadd [#allocation5], %s14
      %s17 = sshll.u32 [#allocation4], 4
      %s18 = int_to_ptr.vmem [resolvable:$true] %s17
      %20 = dma.hbm_to_vmem [thread:$0]  %s0, 128, %s18, [#allocation5]
    $region5: #{tpu_custom_call.1} parent=1 // pred_fallthru
      _
    // Predicated region
    $region6: #{tpu_custom_call.1} parent=1 // pred_check
      _
    $region7: #{tpu_custom_call.1} parent=1 // pred_check_branch
      %22 = sbr.rel (0) target = $region9
    $region8: #{tpu_custom_call.1} parent=1 // pred_region
      %s24 = ssub.s32 128, 128
      %25 = vsyncadd [#allocation8], %s24
      %s27 = sshll.u32 [#allocation7], 4
      %s28 = int_to_ptr.vmem [resolvable:$true] %s27
      %30 = dma.hbm_to_vmem [thread:$0]  %s1, 128, %s28, [#allocation8]
    $region9: #{tpu_custom_call.1} parent=1 // pred_fallthru
      _
    // Predicated region
    $region10: #{tpu_custom_call.1} parent=1 // pred_check
      _
    $region11: #{tpu_custom_call.1} parent=1 // pred_check_branch
      %32 = sbr.rel (0) target = $region13
    $region12: #{tpu_custom_call.1} parent=1 // pred_region
      %s34 = ssub.s32 128, 128
      %35 = vsyncadd [#allocation8], %s34
      %s37 = sshll.u32 [#allocation9], 4
      %s38 = int_to_ptr.vmem [resolvable:$true] %s37
      %40 = dma.hbm_to_vmem [thread:$0]  %s2, 128, %s38, [#allocation8]
    $region13: #{tpu_custom_call.1} parent=1 // pred_fallthru
      _
    // Predicated region
    $region14: #{tpu_custom_call.1} parent=1 // pred_check
      _
    $region15: #{tpu_custom_call.1} parent=1 // pred_check_branch
      %42 = sbr.rel (0) target = $region17
    $region16: #{tpu_custom_call.1} parent=1 // pred_region
      %43 = dma.done [#allocation5], 128
    $region17: #{tpu_custom_call.1} parent=1 // pred_fallthru
      _
    // Predicated region
    $region18: #{tpu_custom_call.1} parent=1 // pred_check
      _
    $region19: #{tpu_custom_call.1} parent=1 // pred_check_branch
      %45 = sbr.rel (0) target = $region21
    $region20: #{tpu_custom_call.1} parent=1 // pred_region
      %46 = dma.done [#allocation8], 128
    $region21: #{tpu_custom_call.1} parent=1 // pred_fallthru
      _
    // Predicated region
    $region22: #{tpu_custom_call.1} parent=1 // pred_check
      _
    $region23: #{tpu_custom_call.1} parent=1 // pred_check_branch
      %48 = sbr.rel (0) target = $region25
    $region24: #{tpu_custom_call.1} parent=1 // pred_region
      %49 = dma.done [#allocation8], 128
    $region25: #{tpu_custom_call.1} parent=1 // pred_fallthru
      _
    %p50 = scmp.eq.s32.totalorder 0, 0
    // Predicated region
    $region26: #{tpu_custom_call.1} parent=1 // pred_check
      %p51 = pneg %p50
    $region27: #{tpu_custom_call.1} parent=1 // pred_check_branch
      %53 = sbr.rel (%p51) target = $region29
    $region28: #{tpu_custom_call.1} parent=1 // pred_region
      %54 = vst [vmem:[#allocation2] sm:$0xff] 0.0
      %55 = vst [vmem:[#allocation2 + $0x8] sm:$0xff] 0.0
      %56 = vst [vmem:[#allocation2 + $0x10] sm:$0xff] 0.0
      %57 = vst [vmem:[#allocation2 + $0x18] sm:$0xff] 0.0
      %58 = vst [vmem:[#allocation2 + $0x20] sm:$0xff] 0.0
      %59 = vst [vmem:[#allocation2 + $0x28] sm:$0xff] 0.0
      %60 = vst [vmem:[#allocation2 + $0x30] sm:$0xff] 0.0
      %61 = vst [vmem:[#allocation2 + $0x38] sm:$0xff] 0.0
      %62 = vst [vmem:[#allocation2 + $0x40] sm:$0xff] 0.0
      %63 = vst [vmem:[#allocation2 + $0x48] sm:$0xff] 0.0
      %64 = vst [vmem:[#allocation3] sm:$0xff] 0.0
      %65 = vst [vmem:[#allocation3 + $0x8] sm:$0xff] 0.0
      %66 = vst [vmem:[#allocation3 + $0x10] sm:$0xff] 0.0
      %67 = vst [vmem:[#allocation3 + $0x18] sm:$0xff] 0.0
      %68 = vst [vmem:[#allocation3 + $0x20] sm:$0xff] 0.0
      %69 = vst [vmem:[#allocation3 + $0x28] sm:$0xff] 0.0
      %70 = vst [vmem:[#allocation3 + $0x30] sm:$0xff] 0.0
      %71 = vst [vmem:[#allocation3 + $0x38] sm:$0xff] 0.0
      %72 = vst [vmem:[#allocation3 + $0x40] sm:$0xff] 0.0
      %73 = vst [vmem:[#allocation3 + $0x48] sm:$0xff] 0.0
    $region29: #{tpu_custom_call.1} parent=1 // pred_fallthru
      _
    %v74 = vld [vmem:[#allocation4] sm:$0xff]
    %v75 = vld [vmem:[#allocation7] sm:$0xff]
    %v76 = vld [vmem:[#allocation9] sm:$0xff]
    %vm77 = vcmp.gt.f32.partialorder %v76, 0.0
    %v78 = vxor.u32 %v74, 2147483648
    %v79 = vmul.f32 %v78, 1.442695
    %v80 = vpow.pop %v79
    %v81 = vadd.f32 %v80, 1.0
    %v82 = vrcp.pop %v81
    %v83 = vmul.f32 1.0, %v82
    %v84 = vsub.f32 %v83, %v75
    %v85 = vand.u32 2147483647, %v84
    %v86 = vmul.f32 %v85, 10.0
    %v87 = vcvt.f32.s32.to.zero.pseudo %v86
    %vm88 = vcmp.lt.s32.totalorder %v87, 9
    %v89 = vsel %vm88, %v87, 9
    %v90 = vsel %vm77, %v89, 10
    %v91 = vmax.f32 %v74, 0.0
    %v92 = vmul.f32 %v74, %v75
    %v93 = vsub.f32 %v91, %v92
    %vm94 = vcmp.ge.f32.partialorder %v74, 0.0
    %v95 = vsub.f32 1.0, %v83
    %v96 = vsel %vm94, %v83, %v95
    %v97 = vlog2.pop %v96
    %v98 = vmul.f32 %v97, 0.6931472
    %v99 = vsub.f32 %v93, %v98
    %vm100 = vcmp.eq.s32.totalorder %v90, 0
    %v101 = vsel %vm100, 1, 0
    %v102 = vcvt.s32.f32 %v101
    %v103 = vld [vmem:[#allocation2] sm:$0xff]
    %v104 = vadd.f32 %v102, 0.0
    %v105 = vadd.f32 %v103, %v104
    %106 = vst [vmem:[#allocation2] sm:$0xff] %v105
    %v107 = vld [vmem:[#allocation3] sm:$0xff]
    %v108 = vmul.f32 %v102, %v99
    %v109 = vadd.f32 %v108, 0.0
    %v110 = vadd.f32 %v107, %v109
    %111 = vst [vmem:[#allocation3] sm:$0xff] %v110
    %vm112 = vcmp.eq.s32.totalorder %v90, 1
    %v113 = vsel %vm112, 1, 0
    %v114 = vcvt.s32.f32 %v113
    %s115 = scalar_lea.vmem [#allocation2], 8
    %v116 = vld [vmem:[%s115] sm:$0xff]
    %v117 = vadd.f32 %v114, 0.0
    %v118 = vadd.f32 %v116, %v117
    %119 = vst [vmem:[%s115] sm:$0xff] %v118
    %s120 = scalar_lea.vmem [#allocation3], 8
    %v121 = vld [vmem:[%s120] sm:$0xff]
    %v122 = vmul.f32 %v114, %v99
    %v123 = vadd.f32 %v122, 0.0
    %v124 = vadd.f32 %v121, %v123
    %125 = vst [vmem:[%s120] sm:$0xff] %v124
    %vm126 = vcmp.eq.s32.totalorder %v90, 2
    %v127 = vsel %vm126, 1, 0
    %v128 = vcvt.s32.f32 %v127
    %s129 = scalar_lea.vmem [#allocation2], 16
    %v130 = vld [vmem:[%s129] sm:$0xff]
    %v131 = vadd.f32 %v128, 0.0
    %v132 = vadd.f32 %v130, %v131
    %133 = vst [vmem:[%s129] sm:$0xff] %v132
    %s134 = scalar_lea.vmem [#allocation3], 16
    %v135 = vld [vmem:[%s134] sm:$0xff]
    %v136 = vmul.f32 %v128, %v99
    %v137 = vadd.f32 %v136, 0.0
    %v138 = vadd.f32 %v135, %v137
    %139 = vst [vmem:[%s134] sm:$0xff] %v138
    %vm140 = vcmp.eq.s32.totalorder %v90, 3
    %v141 = vsel %vm140, 1, 0
    %v142 = vcvt.s32.f32 %v141
    %s143 = scalar_lea.vmem [#allocation2], 24
    %v144 = vld [vmem:[%s143] sm:$0xff]
    %v145 = vadd.f32 %v142, 0.0
    %v146 = vadd.f32 %v144, %v145
    %147 = vst [vmem:[%s143] sm:$0xff] %v146
    %s148 = scalar_lea.vmem [#allocation3], 24
    %v149 = vld [vmem:[%s148] sm:$0xff]
    %v150 = vmul.f32 %v142, %v99
    %v151 = vadd.f32 %v150, 0.0
    %v152 = vadd.f32 %v149, %v151
    %153 = vst [vmem:[%s148] sm:$0xff] %v152
    %vm154 = vcmp.eq.s32.totalorder %v90, 4
    %v155 = vsel %vm154, 1, 0
    %v156 = vcvt.s32.f32 %v155
    %s157 = scalar_lea.vmem [#allocation2], 32
    %v158 = vld [vmem:[%s157] sm:$0xff]
    %v159 = vadd.f32 %v156, 0.0
    %v160 = vadd.f32 %v158, %v159
    %161 = vst [vmem:[%s157] sm:$0xff] %v160
    %s162 = scalar_lea.vmem [#allocation3], 32
    %v163 = vld [vmem:[%s162] sm:$0xff]
    %v164 = vmul.f32 %v156, %v99
    %v165 = vadd.f32 %v164, 0.0
    %v166 = vadd.f32 %v163, %v165
    %167 = vst [vmem:[%s162] sm:$0xff] %v166
    %vm168 = vcmp.eq.s32.totalorder %v90, 5
    %v169 = vsel %vm168, 1, 0
    %v170 = vcvt.s32.f32 %v169
    %s171 = scalar_lea.vmem [#allocation2], 40
    %v172 = vld [vmem:[%s171] sm:$0xff]
    %v173 = vadd.f32 %v170, 0.0
    %v174 = vadd.f32 %v172, %v173
    %175 = vst [vmem:[%s171] sm:$0xff] %v174
    %s176 = scalar_lea.vmem [#allocation3], 40
    %v177 = vld [vmem:[%s176] sm:$0xff]
    %v178 = vmul.f32 %v170, %v99
    %v179 = vadd.f32 %v178, 0.0
    %v180 = vadd.f32 %v177, %v179
    %181 = vst [vmem:[%s176] sm:$0xff] %v180
    %vm182 = vcmp.eq.s32.totalorder %v90, 6
    %v183 = vsel %vm182, 1, 0
    %v184 = vcvt.s32.f32 %v183
    %s185 = scalar_lea.vmem [#allocation2], 48
    %v186 = vld [vmem:[%s185] sm:$0xff]
    %v187 = vadd.f32 %v184, 0.0
    %v188 = vadd.f32 %v186, %v187
    %189 = vst [vmem:[%s185] sm:$0xff] %v188
    %s190 = scalar_lea.vmem [#allocation3], 48
    %v191 = vld [vmem:[%s190] sm:$0xff]
    %v192 = vmul.f32 %v184, %v99
    %v193 = vadd.f32 %v192, 0.0
    %v194 = vadd.f32 %v191, %v193
    %195 = vst [vmem:[%s190] sm:$0xff] %v194
    %vm196 = vcmp.eq.s32.totalorder %v90, 7
    %v197 = vsel %vm196, 1, 0
    %v198 = vcvt.s32.f32 %v197
    %s199 = scalar_lea.vmem [#allocation2], 56
    %v200 = vld [vmem:[%s199] sm:$0xff]
    %v201 = vadd.f32 %v198, 0.0
    %v202 = vadd.f32 %v200, %v201
    %203 = vst [vmem:[%s199] sm:$0xff] %v202
    %s204 = scalar_lea.vmem [#allocation3], 56
    %v205 = vld [vmem:[%s204] sm:$0xff]
    %v206 = vmul.f32 %v198, %v99
    %v207 = vadd.f32 %v206, 0.0
    %v208 = vadd.f32 %v205, %v207
    %209 = vst [vmem:[%s204] sm:$0xff] %v208
    %vm210 = vcmp.eq.s32.totalorder %v90, 8
    %v211 = vsel %vm210, 1, 0
    %v212 = vcvt.s32.f32 %v211
    %s213 = scalar_lea.vmem [#allocation2], 64
    %v214 = vld [vmem:[%s213] sm:$0xff]
    %v215 = vadd.f32 %v212, 0.0
    %v216 = vadd.f32 %v214, %v215
    %217 = vst [vmem:[%s213] sm:$0xff] %v216
    %s218 = scalar_lea.vmem [#allocation3], 64
    %v219 = vld [vmem:[%s218] sm:$0xff]
    %v220 = vmul.f32 %v212, %v99
    %v221 = vadd.f32 %v220, 0.0
    %v222 = vadd.f32 %v219, %v221
    %223 = vst [vmem:[%s218] sm:$0xff] %v222
    %vm224 = vcmp.eq.s32.totalorder %v90, 9
    %v225 = vsel %vm224, 1, 0
    %v226 = vcvt.s32.f32 %v225
    %s227 = scalar_lea.vmem [#allocation2], 72
    %v228 = vld [vmem:[%s227] sm:$0xff]
    %v229 = vadd.f32 %v226, 0.0
    %v230 = vadd.f32 %v228, %v229
    %231 = vst [vmem:[%s227] sm:$0xff] %v230
    %s232 = scalar_lea.vmem [#allocation3], 72
    %v233 = vld [vmem:[%s232] sm:$0xff]
    %v234 = vmul.f32 %v226, %v99
    %v235 = vadd.f32 %v234, 0.0
    %v236 = vadd.f32 %v233, %v235
    %237 = vst [vmem:[%s232] sm:$0xff] %v236
    // Predicated region
    $region30: #{tpu_custom_call.1} parent=1 // pred_check
      %p238 = pneg %p50
    $region31: #{tpu_custom_call.1} parent=1 // pred_check_branch
      %240 = sbr.rel (%p238) target = $region33
    $region32: #{tpu_custom_call.1} parent=1 // pred_region
      %v241 = vld [vmem:[#allocation2] sm:$0xff]
      %242 = vadd.xlane.f32.xlu0 %v241
      %v243 = vpop.xlane.xlu0 %242
      %v244 = vrot.slane %v243, 4
      %v245 = vadd.f32 %v243, %v244
      %v246 = vrot.slane %v245, 2
      %v247 = vadd.f32 %v245, %v246
      %v248 = vrot.slane %v247, 1
      %v249 = vadd.f32 %v247, %v248
      %s250 = vtos %v249
      %v251 = vld [vmem:[#allocation3] sm:$0xff]
      %252 = vadd.xlane.f32.xlu0 %v251
      %v253 = vpop.xlane.xlu0 %252
      %v254 = vrot.slane %v253, 4
      %v255 = vadd.f32 %v253, %v254
      %v256 = vrot.slane %v255, 2
      %v257 = vadd.f32 %v255, %v256
      %v258 = vrot.slane %v257, 1
      %v259 = vadd.f32 %v257, %v258
      %s260 = vtos %v259
      %p261 = scmp.gt.f32.partialorder %s250, 0.0
      %s262 = smax.f32 %s250, 1.0
      %v263 = vstv %s262
      %v264 = vrcp.pop %v263
      %s265 = vtos %v264
      %s266 = smul.f32 %s260, %s265
      %s267 = scalar_select %p261, %s266, 0.0
      %s268 = sadd.f32 %s267, 0.0
      %s269 = scalar_select %p261, 1.0, 0.0
      %s270 = sadd.f32 %s269, 0.0
      %v271 = vld [vmem:[%s115] sm:$0xff]
      %272 = vadd.xlane.f32.xlu0 %v271
      %v273 = vpop.xlane.xlu0 %272
      %v274 = vrot.slane %v273, 4
      %v275 = vadd.f32 %v273, %v274
      %v276 = vrot.slane %v275, 2
      %v277 = vadd.f32 %v275, %v276
      %v278 = vrot.slane %v277, 1
      %v279 = vadd.f32 %v277, %v278
      %s280 = vtos %v279
      %v281 = vld [vmem:[%s120] sm:$0xff]
      %282 = vadd.xlane.f32.xlu0 %v281
      %v283 = vpop.xlane.xlu0 %282
      %v284 = vrot.slane %v283, 4
      %v285 = vadd.f32 %v283, %v284
      %v286 = vrot.slane %v285, 2
      %v287 = vadd.f32 %v285, %v286
      %v288 = vrot.slane %v287, 1
      %v289 = vadd.f32 %v287, %v288
      %s290 = vtos %v289
      %p291 = scmp.gt.f32.partialorder %s280, 0.0
      %s292 = smax.f32 %s280, 1.0
      %v293 = vstv %s292
      %v294 = vrcp.pop %v293
      %s295 = vtos %v294
      %s296 = smul.f32 %s290, %s295
      %s297 = scalar_select %p291, %s296, 0.0
      %s298 = sadd.f32 %s268, %s297
      %s299 = scalar_select %p291, 1.0, 0.0
      %s300 = sadd.f32 %s270, %s299
      %v301 = vld [vmem:[%s129] sm:$0xff]
      %302 = vadd.xlane.f32.xlu0 %v301
      %v303 = vpop.xlane.xlu0 %302
      %v304 = vrot.slane %v303, 4
      %v305 = vadd.f32 %v303, %v304
      %v306 = vrot.slane %v305, 2
      %v307 = vadd.f32 %v305, %v306
      %v308 = vrot.slane %v307, 1
      %v309 = vadd.f32 %v307, %v308
      %s310 = vtos %v309
      %v311 = vld [vmem:[%s134] sm:$0xff]
      %312 = vadd.xlane.f32.xlu0 %v311
      %v313 = vpop.xlane.xlu0 %312
      %v314 = vrot.slane %v313, 4
      %v315 = vadd.f32 %v313, %v314
      %v316 = vrot.slane %v315, 2
      %v317 = vadd.f32 %v315, %v316
      %v318 = vrot.slane %v317, 1
      %v319 = vadd.f32 %v317, %v318
      %s320 = vtos %v319
      %p321 = scmp.gt.f32.partialorder %s310, 0.0
      %s322 = smax.f32 %s310, 1.0
      %v323 = vstv %s322
      %v324 = vrcp.pop %v323
      %s325 = vtos %v324
      %s326 = smul.f32 %s320, %s325
      %s327 = scalar_select %p321, %s326, 0.0
      %s328 = sadd.f32 %s298, %s327
      %s329 = scalar_select %p321, 1.0, 0.0
      %s330 = sadd.f32 %s300, %s329
      %v331 = vld [vmem:[%s143] sm:$0xff]
      %332 = vadd.xlane.f32.xlu0 %v331
      %v333 = vpop.xlane.xlu0 %332
      %v334 = vrot.slane %v333, 4
      %v335 = vadd.f32 %v333, %v334
      %v336 = vrot.slane %v335, 2
      %v337 = vadd.f32 %v335, %v336
      %v338 = vrot.slane %v337, 1
      %v339 = vadd.f32 %v337, %v338
      %s340 = vtos %v339
      %v341 = vld [vmem:[%s148] sm:$0xff]
      %342 = vadd.xlane.f32.xlu0 %v341
      %v343 = vpop.xlane.xlu0 %342
      %v344 = vrot.slane %v343, 4
      %v345 = vadd.f32 %v343, %v344
      %v346 = vrot.slane %v345, 2
      %v347 = vadd.f32 %v345, %v346
      %v348 = vrot.slane %v347, 1
      %v349 = vadd.f32 %v347, %v348
      %s350 = vtos %v349
      %p351 = scmp.gt.f32.partialorder %s340, 0.0
      %s352 = smax.f32 %s340, 1.0
      %v353 = vstv %s352
      %v354 = vrcp.pop %v353
      %s355 = vtos %v354
      %s356 = smul.f32 %s350, %s355
      %s357 = scalar_select %p351, %s356, 0.0
      %s358 = sadd.f32 %s328, %s357
      %s359 = scalar_select %p351, 1.0, 0.0
      %s360 = sadd.f32 %s330, %s359
      %v361 = vld [vmem:[%s157] sm:$0xff]
      %362 = vadd.xlane.f32.xlu0 %v361
      %v363 = vpop.xlane.xlu0 %362
      %v364 = vrot.slane %v363, 4
      %v365 = vadd.f32 %v363, %v364
      %v366 = vrot.slane %v365, 2
      %v367 = vadd.f32 %v365, %v366
      %v368 = vrot.slane %v367, 1
      %v369 = vadd.f32 %v367, %v368
      %s370 = vtos %v369
      %v371 = vld [vmem:[%s162] sm:$0xff]
      %372 = vadd.xlane.f32.xlu0 %v371
      %v373 = vpop.xlane.xlu0 %372
      %v374 = vrot.slane %v373, 4
      %v375 = vadd.f32 %v373, %v374
      %v376 = vrot.slane %v375, 2
      %v377 = vadd.f32 %v375, %v376
      %v378 = vrot.slane %v377, 1
      %v379 = vadd.f32 %v377, %v378
      %s380 = vtos %v379
      %p381 = scmp.gt.f32.partialorder %s370, 0.0
      %s382 = smax.f32 %s370, 1.0
      %v383 = vstv %s382
      %v384 = vrcp.pop %v383
      %s385 = vtos %v384
      %s386 = smul.f32 %s380, %s385
      %s387 = scalar_select %p381, %s386, 0.0
      %s388 = sadd.f32 %s358, %s387
      %s389 = scalar_select %p381, 1.0, 0.0
      %s390 = sadd.f32 %s360, %s389
      %v391 = vld [vmem:[%s171] sm:$0xff]
      %392 = vadd.xlane.f32.xlu0 %v391
      %v393 = vpop.xlane.xlu0 %392
      %v394 = vrot.slane %v393, 4
      %v395 = vadd.f32 %v393, %v394
      %v396 = vrot.slane %v395, 2
      %v397 = vadd.f32 %v395, %v396
      %v398 = vrot.slane %v397, 1
      %v399 = vadd.f32 %v397, %v398
      %s400 = vtos %v399
      %v401 = vld [vmem:[%s176] sm:$0xff]
      %402 = vadd.xlane.f32.xlu0 %v401
      %v403 = vpop.xlane.xlu0 %402
      %v404 = vrot.slane %v403, 4
      %v405 = vadd.f32 %v403, %v404
      %v406 = vrot.slane %v405, 2
      %v407 = vadd.f32 %v405, %v406
      %v408 = vrot.slane %v407, 1
      %v409 = vadd.f32 %v407, %v408
      %s410 = vtos %v409
      %p411 = scmp.gt.f32.partialorder %s400, 0.0
      %s412 = smax.f32 %s400, 1.0
      %v413 = vstv %s412
      %v414 = vrcp.pop %v413
      %s415 = vtos %v414
      %s416 = smul.f32 %s410, %s415
      %s417 = scalar_select %p411, %s416, 0.0
      %s418 = sadd.f32 %s388, %s417
      %s419 = scalar_select %p411, 1.0, 0.0
      %s420 = sadd.f32 %s390, %s419
      %v421 = vld [vmem:[%s185] sm:$0xff]
      %422 = vadd.xlane.f32.xlu0 %v421
      %v423 = vpop.xlane.xlu0 %422
      %v424 = vrot.slane %v423, 4
      %v425 = vadd.f32 %v423, %v424
      %v426 = vrot.slane %v425, 2
      %v427 = vadd.f32 %v425, %v426
      %v428 = vrot.slane %v427, 1
      %v429 = vadd.f32 %v427, %v428
      %s430 = vtos %v429
      %v431 = vld [vmem:[%s190] sm:$0xff]
      %432 = vadd.xlane.f32.xlu0 %v431
      %v433 = vpop.xlane.xlu0 %432
      %v434 = vrot.slane %v433, 4
      %v435 = vadd.f32 %v433, %v434
      %v436 = vrot.slane %v435, 2
      %v437 = vadd.f32 %v435, %v436
      %v438 = vrot.slane %v437, 1
      %v439 = vadd.f32 %v437, %v438
      %s440 = vtos %v439
      %p441 = scmp.gt.f32.partialorder %s430, 0.0
      %s442 = smax.f32 %s430, 1.0
      %v443 = vstv %s442
      %v444 = vrcp.pop %v443
      %s445 = vtos %v444
      %s446 = smul.f32 %s440, %s445
      %s447 = scalar_select %p441, %s446, 0.0
      %s448 = sadd.f32 %s418, %s447
      %s449 = scalar_select %p441, 1.0, 0.0
      %s450 = sadd.f32 %s420, %s449
      %v451 = vld [vmem:[%s199] sm:$0xff]
      %452 = vadd.xlane.f32.xlu0 %v451
      %v453 = vpop.xlane.xlu0 %452
      %v454 = vrot.slane %v453, 4
      %v455 = vadd.f32 %v453, %v454
      %v456 = vrot.slane %v455, 2
      %v457 = vadd.f32 %v455, %v456
      %v458 = vrot.slane %v457, 1
      %v459 = vadd.f32 %v457, %v458
      %s460 = vtos %v459
      %v461 = vld [vmem:[%s204] sm:$0xff]
      %462 = vadd.xlane.f32.xlu0 %v461
      %v463 = vpop.xlane.xlu0 %462
      %v464 = vrot.slane %v463, 4
      %v465 = vadd.f32 %v463, %v464
      %v466 = vrot.slane %v465, 2
      %v467 = vadd.f32 %v465, %v466
      %v468 = vrot.slane %v467, 1
      %v469 = vadd.f32 %v467, %v468
      %s470 = vtos %v469
      %p471 = scmp.gt.f32.partialorder %s460, 0.0
      %s472 = smax.f32 %s460, 1.0
      %v473 = vstv %s472
      %v474 = vrcp.pop %v473
      %s475 = vtos %v474
      %s476 = smul.f32 %s470, %s475
      %s477 = scalar_select %p471, %s476, 0.0
      %s478 = sadd.f32 %s448, %s477
      %s479 = scalar_select %p471, 1.0, 0.0
      %s480 = sadd.f32 %s450, %s479
      %v481 = vld [vmem:[%s213] sm:$0xff]
      %482 = vadd.xlane.f32.xlu0 %v481
      %v483 = vpop.xlane.xlu0 %482
      %v484 = vrot.slane %v483, 4
      %v485 = vadd.f32 %v483, %v484
      %v486 = vrot.slane %v485, 2
      %v487 = vadd.f32 %v485, %v486
      %v488 = vrot.slane %v487, 1
      %v489 = vadd.f32 %v487, %v488
      %s490 = vtos %v489
      %v491 = vld [vmem:[%s218] sm:$0xff]
      %492 = vadd.xlane.f32.xlu0 %v491
      %v493 = vpop.xlane.xlu0 %492
      %v494 = vrot.slane %v493, 4
      %v495 = vadd.f32 %v493, %v494
      %v496 = vrot.slane %v495, 2
      %v497 = vadd.f32 %v495, %v496
      %v498 = vrot.slane %v497, 1
      %v499 = vadd.f32 %v497, %v498
      %s500 = vtos %v499
      %p501 = scmp.gt.f32.partialorder %s490, 0.0
      %s502 = smax.f32 %s490, 1.0
      %v503 = vstv %s502
      %v504 = vrcp.pop %v503
      %s505 = vtos %v504
      %s506 = smul.f32 %s500, %s505
      %s507 = scalar_select %p501, %s506, 0.0
      %s508 = sadd.f32 %s478, %s507
      %s509 = scalar_select %p501, 1.0, 0.0
      %s510 = sadd.f32 %s480, %s509
      %v511 = vld [vmem:[%s227] sm:$0xff]
      %512 = vadd.xlane.f32.xlu0 %v511
      %v513 = vpop.xlane.xlu0 %512
      %v514 = vrot.slane %v513, 4
      %v515 = vadd.f32 %v513, %v514
      %v516 = vrot.slane %v515, 2
      %v517 = vadd.f32 %v515, %v516
      %v518 = vrot.slane %v517, 1
      %v519 = vadd.f32 %v517, %v518
      %s520 = vtos %v519
      %v521 = vld [vmem:[%s232] sm:$0xff]
      %522 = vadd.xlane.f32.xlu0 %v521
      %v523 = vpop.xlane.xlu0 %522
      %v524 = vrot.slane %v523, 4
      %v525 = vadd.f32 %v523, %v524
      %v526 = vrot.slane %v525, 2
      %v527 = vadd.f32 %v525, %v526
      %v528 = vrot.slane %v527, 1
      %v529 = vadd.f32 %v527, %v528
      %s530 = vtos %v529
      %p531 = scmp.gt.f32.partialorder %s520, 0.0
      %s532 = smax.f32 %s520, 1.0
      %v533 = vstv %s532
      %v534 = vrcp.pop %v533
      %s535 = vtos %v534
      %s536 = smul.f32 %s530, %s535
      %s537 = scalar_select %p531, %s536, 0.0
      %s538 = sadd.f32 %s508, %s537
      %s539 = scalar_select %p531, 1.0, 0.0
      %s540 = sadd.f32 %s510, %s539
      %p541 = scmp.gt.f32.partialorder %s540, 0.0
      %v542 = vstv %s540
      %v543 = vrcp.pop %v542
      %s544 = vtos %v543
      %s545 = smul.f32 %s538, %s544
      %s546 = scalar_select %p541, %s545, 0.0
      %s547 = scalar_lea.smem [#allocation10], 0
      %548 = sst [smem:[%s547]] %s546
    $region33: #{tpu_custom_call.1} parent=1 // pred_fallthru
      _
    // Predicated region
    $region34: #{tpu_custom_call.1} parent=1 // pred_check
      _
    $region35: #{tpu_custom_call.1} parent=1 // pred_check_branch
      %550 = sbr.rel (0) target = $region37
    $region36: #{tpu_custom_call.1} parent=1 // pred_region
      %s552 = ssub.s32 16, 16
      %553 = vsyncadd [#allocation6], %s552
      %556 = dma.smem_to_hbm [#allocation10], 16, %s3, [#allocation6]
    $region37: #{tpu_custom_call.1} parent=1 // pred_fallthru
      _
    // Predicated region
    $region38: #{tpu_custom_call.1} parent=1 // pred_check
      _
    $region39: #{tpu_custom_call.1} parent=1 // pred_check_branch
      %558 = sbr.rel (0) target = $region41
    $region40: #{tpu_custom_call.1} parent=1 // pred_region
      %559 = dma.done [#allocation6], 16
    $region41: #{tpu_custom_call.1} parent=1 // pred_fallthru
      _
    %560 = sfence
    %561 = vsyncpa [#allocation5], 1
    %562 = vsyncpa [#allocation8], 1
    %563 = vsyncpa [#allocation6], 1

</llo_original>
